<compile_context>
chip_gen: v6e
topology: v6e:2x2x1
jax: 0.10.0
libtpu: 0.0.40
codegen_flags: <defaults>
</compile_context>

<pallas_src>
import jax
import jax.numpy as jnp
from jax import lax
from jax.experimental import pallas as pl
from jax.experimental.pallas import tpu as pltpu

_LANES = 128
_SUB = 16  # sublane rows per in-kernel compute chunk (16 * 128 = 2048 pixels, vreg-resident)


def attention_gate_kernel(wg_ref, wx_ref, wp_ref, b_ref, bp_ref,
                          g_ref, x_ref, out_ref):
    """One (batch, pixel-block) grid step.

    g_ref:   [1, F_g, S_TILE, 128]  VMEM (pixels on sublane x lane)
    x_ref:   [1, F_l, S_TILE, 128]  VMEM
    out_ref: [1, F_l, S_TILE, 128]  VMEM
    wg/wx/wp/b/bp: SMEM scalar tables (BatchNorm already folded in).
    """
    f_g = g_ref.shape[1]
    f_l = x_ref.shape[1]
    f_int = wg_ref.shape[0]
    s_tile = g_ref.shape[2]

    # Hoist all SMEM scalar reads out of the pixel loop (loop-invariant).
    wg = [[wg_ref[f, c] for c in range(f_g)] for f in range(f_int)]
    wx = [[wx_ref[f, c] for c in range(f_l)] for f in range(f_int)]
    wp = [wp_ref[f] for f in range(f_int)]
    bb = [b_ref[f] for f in range(f_int)]
    bp = bp_ref[0]

    def compute_chunk(off, sz):
        sl = pl.ds(off, sz)
        g_ch = [g_ref[0, c, sl, :].astype(jnp.float32) for c in range(f_g)]
        x_ch = [x_ref[0, c, sl, :].astype(jnp.float32) for c in range(f_l)]

        # Tiny channel mix on the VPU as scalar-splat MACs (MXU would need a transpose
        # plus padding an 8x8 weight into a 128/256-wide tile -> slower).
        p = None
        for f in range(f_int):
            acc = wg[f][0] * g_ch[0]
            for c in range(1, f_g):
                acc = acc + wg[f][c] * g_ch[c]
            for c in range(f_l):
                acc = acc + wx[f][c] * x_ch[c]
            a = jnp.maximum(acc + bb[f], 0.0)              # folded-BN bias + ReLU
            p = wp[f] * a if p is None else p + wp[f] * a

        psi = 1.0 / (1.0 + jnp.exp(-(p + bp)))             # exp on the EUP

        for c in range(f_l):
            out_ref[0, c, sl, :] = (x_ch[c] * psi).astype(out_ref.dtype)

    # Chunk the sublane axis so intermediates stay in vregs while the DMA block is large.
    n_full = s_tile // _SUB
    rem = s_tile - n_full * _SUB
    if n_full > 0:
        def body(j, carry):
            compute_chunk(pl.multiple_of(j * _SUB, _SUB), _SUB)
            return carry
        lax.fori_loop(0, n_full, body, 0)
    if rem > 0:
        compute_chunk(n_full * _SUB, rem)


def _pick_s_tile(S, n_batch, f_max, itemsize, target_block_bytes):
    """Pick the pixel-block sublane count: ~1 MiB per array per block, multiple of 8."""
    row_bytes = _LANES * f_max * itemsize
    s_tile = int(max(8, min(512, target_block_bytes // max(row_bytes, 1))))
    s_tile -= s_tile % 8
    if s_tile >= S:
        s_tile = S
        # v7x has 2 TensorCores: with a ("parallel","parallel") grid make sure there are
        # at least 2 independent blocks when the batch alone can't provide them.
        if n_batch == 1 and S >= 16:
            s_tile = ((pl.cdiv(S, 2) + 7) // 8) * 8
    return s_tile


def attention_gate(g, x, params, *, target_block_bytes=1 << 20):
    """g, x: NCHW arrays (f32 or bf16 storage). Returns x * psi in NCHW, dtype of x."""
    N, F_g, H, W = g.shape
    Nx, F_l, Hx, Wx = x.shape
    assert (N, H, W) == (Nx, Hx, Wx)

    HW = H * W
    S = pl.cdiv(HW, _LANES)
    HW_pad = S * _LANES

    g_r = g.reshape(N, F_g, HW)
    x_r = x.reshape(N, F_l, HW)
    if HW_pad != HW:
        # TODO(synk): ragged H*W (not a multiple of 128) pays one pad + one slice copy;
        # an in-kernel masked tail store would avoid it (common image sizes are aligned).
        pad = HW_pad - HW
        g_r = jnp.pad(g_r, ((0, 0), (0, 0), (0, pad)))
        x_r = jnp.pad(x_r, ((0, 0), (0, 0), (0, pad)))
    g4 = g_r.reshape(N, F_g, S, _LANES)   # free reshape: lane-dense, no transpose
    x4 = x_r.reshape(N, F_l, S, _LANES)

    s_tile = _pick_s_tile(S, N, max(F_g, F_l), x.dtype.itemsize, target_block_bytes)
    grid = (N, pl.cdiv(S, s_tile))

    smem = pl.BlockSpec(memory_space=pltpu.MemorySpace.SMEM)
    out4 = pl.pallas_call(
        attention_gate_kernel,
        out_shape=jax.ShapeDtypeStruct((N, F_l, S, _LANES), x.dtype),
        grid_spec=pltpu.PrefetchScalarGridSpec(
            num_scalar_prefetch=0,
            grid=grid,
            in_specs=[
                smem, smem, smem, smem, smem,                    # wg, wx, wp, b, bp
                pl.BlockSpec((1, F_g, s_tile, _LANES), lambda n, s: (n, 0, s, 0)),
                pl.BlockSpec((1, F_l, s_tile, _LANES), lambda n, s: (n, 0, s, 0)),
            ],
            out_specs=pl.BlockSpec((1, F_l, s_tile, _LANES), lambda n, s: (n, 0, s, 0)),
        ),
        compiler_params=pltpu.CompilerParams(
            dimension_semantics=("parallel", "parallel"),
            vmem_limit_bytes=32 * 1024 * 1024,
        ),
    )(params["wg"], params["wx"], params["wp"], params["b"], params["bp"], g4, x4)

    out = out4.reshape(N, F_l, HW_pad)
    if HW_pad != HW:
        out = out[:, :, :HW]
    return out.reshape(N, F_l, H, W)


# ----------------------------- parameters / reference -----------------------------

def make_raw_params(key, F_g, F_l, F_int):
    """Synthetic Conv2d(1x1) weights/biases + non-trivial inference-mode BN stats."""
    ks = jax.random.split(key, 6)

    def bn_stats(c, base):
        r = jnp.arange(c, dtype=jnp.float32)
        return dict(gamma=1.0 + 0.05 * r + base, beta=0.02 * r - base,
                    mean=0.01 * r, var=1.0 + 0.1 * r)

    return dict(
        wg=0.3 * jax.random.normal(ks[0], (F_int, F_g), jnp.float32),
        bg=0.1 * jax.random.normal(ks[1], (F_int,), jnp.float32),
        wx=0.3 * jax.random.normal(ks[2], (F_int, F_l), jnp.float32),
        bx=0.1 * jax.random.normal(ks[3], (F_int,), jnp.float32),
        wp=0.3 * jax.random.normal(ks[4], (1, F_int), jnp.float32),
        bp=0.1 * jax.random.normal(ks[5], (1,), jnp.float32),
        bn_g=bn_stats(F_int, 0.00), bn_x=bn_stats(F_int, 0.01), bn_p=bn_stats(1, 0.02),
    )


def _fold_bn(w, b, bn, eps=1e-5):
    """Fold inference-mode BatchNorm into a 1x1 conv stored as [C_out, C_in]."""
    scale = bn["gamma"] / jnp.sqrt(bn["var"] + eps)
    return w * scale[:, None], (b - bn["mean"]) * scale + bn["beta"]


def fold_params(raw, eps=1e-5):
    wg, bg = _fold_bn(raw["wg"], raw["bg"], raw["bn_g"], eps)
    wx, bx = _fold_bn(raw["wx"], raw["bx"], raw["bn_x"], eps)
    wp, bp = _fold_bn(raw["wp"], raw["bp"], raw["bn_p"], eps)
    return dict(
        wg=wg,                # [F_int, F_g]
        wx=wx,                # [F_int, F_l]
        wp=wp.reshape(-1),    # [F_int]
        b=bg + bx,            # [F_int]  (branch biases pre-summed)
        bp=bp.reshape(-1),    # [1]
    )


def attention_gate_ref(g, x, raw, eps=1e-5):
    """Pure-JAX reference applying conv + BatchNorm UNFOLDED (PyTorch eval-mode math),
    so the BN folding used by the kernel is validated too."""
    def conv_bn(w, b, bn, inp):                                   # inp: [N, Cin, P]
        y = jnp.einsum("oc,ncp->nop", w, inp) + b[None, :, None]
        scale = bn["gamma"] / jnp.sqrt(bn["var"] + eps)
        return ((y - bn["mean"][None, :, None]) * scale[None, :, None]
                + bn["beta"][None, :, None])

    N, F_g, H, W = g.shape
    F_l = x.shape[1]
    g_r = g.reshape(N, F_g, -1).astype(jnp.float32)
    x_r = x.reshape(N, F_l, -1).astype(jnp.float32)
    a = jnp.maximum(conv_bn(raw["wg"], raw["bg"], raw["bn_g"], g_r)
                    + conv_bn(raw["wx"], raw["bx"], raw["bn_x"], x_r), 0.0)
    p = conv_bn(raw["wp"], raw["bp"], raw["bn_p"], a)
    psi = jax.nn.sigmoid(p)
    return (x_r * psi).reshape(x.shape).astype(x.dtype)


if __name__ == "__main__":
    key = jax.random.PRNGKey(0)
    k_g, k_x, k_p = jax.random.split(key, 3)

    N, F_g, F_l, F_int, H, W = 2, 4, 4, 8, 16, 16
    g = jax.random.normal(k_g, (N, F_g, H, W), jnp.float32)
    x = jax.random.normal(k_x, (N, F_l, H, W), jnp.float32)

    raw = make_raw_params(k_p, F_g, F_l, F_int)
    params = fold_params(raw)

    out = attention_gate(g, x, params)
    out = jax.block_until_ready(out)

    ref = attention_gate_ref(g, x, raw)
    assert out.shape == x.shape
    err = jnp.max(jnp.abs(out - ref))
    assert jnp.allclose(out, ref, atol=1e-5, rtol=1e-5), f"mismatch vs reference, max err {err}"
    print("KERNEL_OK")
</pallas_src>

<mosaic_0001>
module attributes {stable_mosaic.version = 11 : i64} {
  func.func @attention_gate_kernel(%arg0: i32, %arg1: i32, %arg2: memref<8x4xf32, #tpu.memory_space<smem>>, %arg3: memref<8x4xf32, #tpu.memory_space<smem>>, %arg4: memref<8xf32, #tpu.memory_space<smem>>, %arg5: memref<8xf32, #tpu.memory_space<smem>>, %arg6: memref<1xf32, #tpu.memory_space<smem>>, %arg7: memref<1x4x2x128xf32, #tpu.memory_space<vmem>>, %arg8: memref<1x4x2x128xf32, #tpu.memory_space<vmem>>, %arg9: memref<1x4x2x128xf32, #tpu.memory_space<vmem>>) attributes {dimension_semantics = [#tpu.dimension_semantics<parallel>, #tpu.dimension_semantics<parallel>], iteration_bounds = array<i64: 2, 1>, scalar_prefetch = 0 : i64, scratch_operands = 0 : i64, tpu.core_type = #tpu.core_type<tc>, window_params = [{transform_indices = @transform_0, window_bounds = array<i64: 8, 4>}, {transform_indices = @transform_1, window_bounds = array<i64: 8, 4>}, {transform_indices = @transform_2, window_bounds = array<i64: 8>}, {transform_indices = @transform_3, window_bounds = array<i64: 8>}, {transform_indices = @transform_4, window_bounds = array<i64: 1>}, {transform_indices = @transform_5, window_bounds = array<i64: 1, 4, 2, 128>}, {transform_indices = @transform_6, window_bounds = array<i64: 1, 4, 2, 128>}, {transform_indices = @transform_7, window_bounds = array<i64: 1, 4, 2, 128>}]} {
    %c0 = arith.constant 0 : index
    %c0_0 = arith.constant 0 : index
    %0 = memref.load %arg2[%c0, %c0_0] : memref<8x4xf32, #tpu.memory_space<smem>>
    %c0_1 = arith.constant 0 : index
    %c1 = arith.constant 1 : index
    %1 = memref.load %arg2[%c0_1, %c1] : memref<8x4xf32, #tpu.memory_space<smem>>
    %c0_2 = arith.constant 0 : index
    %c2 = arith.constant 2 : index
    %2 = memref.load %arg2[%c0_2, %c2] : memref<8x4xf32, #tpu.memory_space<smem>>
    %c0_3 = arith.constant 0 : index
    %c3 = arith.constant 3 : index
    %3 = memref.load %arg2[%c0_3, %c3] : memref<8x4xf32, #tpu.memory_space<smem>>
    %c1_4 = arith.constant 1 : index
    %c0_5 = arith.constant 0 : index
    %4 = memref.load %arg2[%c1_4, %c0_5] : memref<8x4xf32, #tpu.memory_space<smem>>
    %c1_6 = arith.constant 1 : index
    %c1_7 = arith.constant 1 : index
    %5 = memref.load %arg2[%c1_6, %c1_7] : memref<8x4xf32, #tpu.memory_space<smem>>
    %c1_8 = arith.constant 1 : index
    %c2_9 = arith.constant 2 : index
    %6 = memref.load %arg2[%c1_8, %c2_9] : memref<8x4xf32, #tpu.memory_space<smem>>
    %c1_10 = arith.constant 1 : index
    %c3_11 = arith.constant 3 : index
    %7 = memref.load %arg2[%c1_10, %c3_11] : memref<8x4xf32, #tpu.memory_space<smem>>
    %c2_12 = arith.constant 2 : index
    %c0_13 = arith.constant 0 : index
    %8 = memref.load %arg2[%c2_12, %c0_13] : memref<8x4xf32, #tpu.memory_space<smem>>
    %c2_14 = arith.constant 2 : index
    %c1_15 = arith.constant 1 : index
    %9 = memref.load %arg2[%c2_14, %c1_15] : memref<8x4xf32, #tpu.memory_space<smem>>
    %c2_16 = arith.constant 2 : index
    %c2_17 = arith.constant 2 : index
    %10 = memref.load %arg2[%c2_16, %c2_17] : memref<8x4xf32, #tpu.memory_space<smem>>
    %c2_18 = arith.constant 2 : index
    %c3_19 = arith.constant 3 : index
    %11 = memref.load %arg2[%c2_18, %c3_19] : memref<8x4xf32, #tpu.memory_space<smem>>
    %c3_20 = arith.constant 3 : index
    %c0_21 = arith.constant 0 : index
    %12 = memref.load %arg2[%c3_20, %c0_21] : memref<8x4xf32, #tpu.memory_space<smem>>
    %c3_22 = arith.constant 3 : index
    %c1_23 = arith.constant 1 : index
    %13 = memref.load %arg2[%c3_22, %c1_23] : memref<8x4xf32, #tpu.memory_space<smem>>
    %c3_24 = arith.constant 3 : index
    %c2_25 = arith.constant 2 : index
    %14 = memref.load %arg2[%c3_24, %c2_25] : memref<8x4xf32, #tpu.memory_space<smem>>
    %c3_26 = arith.constant 3 : index
    %c3_27 = arith.constant 3 : index
    %15 = memref.load %arg2[%c3_26, %c3_27] : memref<8x4xf32, #tpu.memory_space<smem>>
    %c4 = arith.constant 4 : index
    %c0_28 = arith.constant 0 : index
    %16 = memref.load %arg2[%c4, %c0_28] : memref<8x4xf32, #tpu.memory_space<smem>>
    %c4_29 = arith.constant 4 : index
    %c1_30 = arith.constant 1 : index
    %17 = memref.load %arg2[%c4_29, %c1_30] : memref<8x4xf32, #tpu.memory_space<smem>>
    %c4_31 = arith.constant 4 : index
    %c2_32 = arith.constant 2 : index
    %18 = memref.load %arg2[%c4_31, %c2_32] : memref<8x4xf32, #tpu.memory_space<smem>>
    %c4_33 = arith.constant 4 : index
    %c3_34 = arith.constant 3 : index
    %19 = memref.load %arg2[%c4_33, %c3_34] : memref<8x4xf32, #tpu.memory_space<smem>>
    %c5 = arith.constant 5 : index
    %c0_35 = arith.constant 0 : index
    %20 = memref.load %arg2[%c5, %c0_35] : memref<8x4xf32, #tpu.memory_space<smem>>
    %c5_36 = arith.constant 5 : index
    %c1_37 = arith.constant 1 : index
    %21 = memref.load %arg2[%c5_36, %c1_37] : memref<8x4xf32, #tpu.memory_space<smem>>
    %c5_38 = arith.constant 5 : index
    %c2_39 = arith.constant 2 : index
    %22 = memref.load %arg2[%c5_38, %c2_39] : memref<8x4xf32, #tpu.memory_space<smem>>
    %c5_40 = arith.constant 5 : index
    %c3_41 = arith.constant 3 : index
    %23 = memref.load %arg2[%c5_40, %c3_41] : memref<8x4xf32, #tpu.memory_space<smem>>
    %c6 = arith.constant 6 : index
    %c0_42 = arith.constant 0 : index
    %24 = memref.load %arg2[%c6, %c0_42] : memref<8x4xf32, #tpu.memory_space<smem>>
    %c6_43 = arith.constant 6 : index
    %c1_44 = arith.constant 1 : index
    %25 = memref.load %arg2[%c6_43, %c1_44] : memref<8x4xf32, #tpu.memory_space<smem>>
    %c6_45 = arith.constant 6 : index
    %c2_46 = arith.constant 2 : index
    %26 = memref.load %arg2[%c6_45, %c2_46] : memref<8x4xf32, #tpu.memory_space<smem>>
    %c6_47 = arith.constant 6 : index
    %c3_48 = arith.constant 3 : index
    %27 = memref.load %arg2[%c6_47, %c3_48] : memref<8x4xf32, #tpu.memory_space<smem>>
    %c7 = arith.constant 7 : index
    %c0_49 = arith.constant 0 : index
    %28 = memref.load %arg2[%c7, %c0_49] : memref<8x4xf32, #tpu.memory_space<smem>>
    %c7_50 = arith.constant 7 : index
    %c1_51 = arith.constant 1 : index
    %29 = memref.load %arg2[%c7_50, %c1_51] : memref<8x4xf32, #tpu.memory_space<smem>>
    %c7_52 = arith.constant 7 : index
    %c2_53 = arith.constant 2 : index
    %30 = memref.load %arg2[%c7_52, %c2_53] : memref<8x4xf32, #tpu.memory_space<smem>>
    %c7_54 = arith.constant 7 : index
    %c3_55 = arith.constant 3 : index
    %31 = memref.load %arg2[%c7_54, %c3_55] : memref<8x4xf32, #tpu.memory_space<smem>>
    %c0_56 = arith.constant 0 : index
    %c0_57 = arith.constant 0 : index
    %32 = memref.load %arg3[%c0_56, %c0_57] : memref<8x4xf32, #tpu.memory_space<smem>>
    %c0_58 = arith.constant 0 : index
    %c1_59 = arith.constant 1 : index
    %33 = memref.load %arg3[%c0_58, %c1_59] : memref<8x4xf32, #tpu.memory_space<smem>>
    %c0_60 = arith.constant 0 : index
    %c2_61 = arith.constant 2 : index
    %34 = memref.load %arg3[%c0_60, %c2_61] : memref<8x4xf32, #tpu.memory_space<smem>>
    %c0_62 = arith.constant 0 : index
    %c3_63 = arith.constant 3 : index
    %35 = memref.load %arg3[%c0_62, %c3_63] : memref<8x4xf32, #tpu.memory_space<smem>>
    %c1_64 = arith.constant 1 : index
    %c0_65 = arith.constant 0 : index
    %36 = memref.load %arg3[%c1_64, %c0_65] : memref<8x4xf32, #tpu.memory_space<smem>>
    %c1_66 = arith.constant 1 : index
    %c1_67 = arith.constant 1 : index
    %37 = memref.load %arg3[%c1_66, %c1_67] : memref<8x4xf32, #tpu.memory_space<smem>>
    %c1_68 = arith.constant 1 : index
    %c2_69 = arith.constant 2 : index
    %38 = memref.load %arg3[%c1_68, %c2_69] : memref<8x4xf32, #tpu.memory_space<smem>>
    %c1_70 = arith.constant 1 : index
    %c3_71 = arith.constant 3 : index
    %39 = memref.load %arg3[%c1_70, %c3_71] : memref<8x4xf32, #tpu.memory_space<smem>>
    %c2_72 = arith.constant 2 : index
    %c0_73 = arith.constant 0 : index
    %40 = memref.load %arg3[%c2_72, %c0_73] : memref<8x4xf32, #tpu.memory_space<smem>>
    %c2_74 = arith.constant 2 : index
    %c1_75 = arith.constant 1 : index
    %41 = memref.load %arg3[%c2_74, %c1_75] : memref<8x4xf32, #tpu.memory_space<smem>>
    %c2_76 = arith.constant 2 : index
    %c2_77 = arith.constant 2 : index
    %42 = memref.load %arg3[%c2_76, %c2_77] : memref<8x4xf32, #tpu.memory_space<smem>>
    %c2_78 = arith.constant 2 : index
    %c3_79 = arith.constant 3 : index
    %43 = memref.load %arg3[%c2_78, %c3_79] : memref<8x4xf32, #tpu.memory_space<smem>>
    %c3_80 = arith.constant 3 : index
    %c0_81 = arith.constant 0 : index
    %44 = memref.load %arg3[%c3_80, %c0_81] : memref<8x4xf32, #tpu.memory_space<smem>>
    %c3_82 = arith.constant 3 : index
    %c1_83 = arith.constant 1 : index
    %45 = memref.load %arg3[%c3_82, %c1_83] : memref<8x4xf32, #tpu.memory_space<smem>>
    %c3_84 = arith.constant 3 : index
    %c2_85 = arith.constant 2 : index
    %46 = memref.load %arg3[%c3_84, %c2_85] : memref<8x4xf32, #tpu.memory_space<smem>>
    %c3_86 = arith.constant 3 : index
    %c3_87 = arith.constant 3 : index
    %47 = memref.load %arg3[%c3_86, %c3_87] : memref<8x4xf32, #tpu.memory_space<smem>>
    %c4_88 = arith.constant 4 : index
    %c0_89 = arith.constant 0 : index
    %48 = memref.load %arg3[%c4_88, %c0_89] : memref<8x4xf32, #tpu.memory_space<smem>>
    %c4_90 = arith.constant 4 : index
    %c1_91 = arith.constant 1 : index
    %49 = memref.load %arg3[%c4_90, %c1_91] : memref<8x4xf32, #tpu.memory_space<smem>>
    %c4_92 = arith.constant 4 : index
    %c2_93 = arith.constant 2 : index
    %50 = memref.load %arg3[%c4_92, %c2_93] : memref<8x4xf32, #tpu.memory_space<smem>>
    %c4_94 = arith.constant 4 : index
    %c3_95 = arith.constant 3 : index
    %51 = memref.load %arg3[%c4_94, %c3_95] : memref<8x4xf32, #tpu.memory_space<smem>>
    %c5_96 = arith.constant 5 : index
    %c0_97 = arith.constant 0 : index
    %52 = memref.load %arg3[%c5_96, %c0_97] : memref<8x4xf32, #tpu.memory_space<smem>>
    %c5_98 = arith.constant 5 : index
    %c1_99 = arith.constant 1 : index
    %53 = memref.load %arg3[%c5_98, %c1_99] : memref<8x4xf32, #tpu.memory_space<smem>>
    %c5_100 = arith.constant 5 : index
    %c2_101 = arith.constant 2 : index
    %54 = memref.load %arg3[%c5_100, %c2_101] : memref<8x4xf32, #tpu.memory_space<smem>>
    %c5_102 = arith.constant 5 : index
    %c3_103 = arith.constant 3 : index
    %55 = memref.load %arg3[%c5_102, %c3_103] : memref<8x4xf32, #tpu.memory_space<smem>>
    %c6_104 = arith.constant 6 : index
    %c0_105 = arith.constant 0 : index
    %56 = memref.load %arg3[%c6_104, %c0_105] : memref<8x4xf32, #tpu.memory_space<smem>>
    %c6_106 = arith.constant 6 : index
    %c1_107 = arith.constant 1 : index
    %57 = memref.load %arg3[%c6_106, %c1_107] : memref<8x4xf32, #tpu.memory_space<smem>>
    %c6_108 = arith.constant 6 : index
    %c2_109 = arith.constant 2 : index
    %58 = memref.load %arg3[%c6_108, %c2_109] : memref<8x4xf32, #tpu.memory_space<smem>>
    %c6_110 = arith.constant 6 : index
    %c3_111 = arith.constant 3 : index
    %59 = memref.load %arg3[%c6_110, %c3_111] : memref<8x4xf32, #tpu.memory_space<smem>>
    %c7_112 = arith.constant 7 : index
    %c0_113 = arith.constant 0 : index
    %60 = memref.load %arg3[%c7_112, %c0_113] : memref<8x4xf32, #tpu.memory_space<smem>>
    %c7_114 = arith.constant 7 : index
    %c1_115 = arith.constant 1 : index
    %61 = memref.load %arg3[%c7_114, %c1_115] : memref<8x4xf32, #tpu.memory_space<smem>>
    %c7_116 = arith.constant 7 : index
    %c2_117 = arith.constant 2 : index
    %62 = memref.load %arg3[%c7_116, %c2_117] : memref<8x4xf32, #tpu.memory_space<smem>>
    %c7_118 = arith.constant 7 : index
    %c3_119 = arith.constant 3 : index
    %63 = memref.load %arg3[%c7_118, %c3_119] : memref<8x4xf32, #tpu.memory_space<smem>>
    %c0_120 = arith.constant 0 : index
    %64 = memref.load %arg4[%c0_120] : memref<8xf32, #tpu.memory_space<smem>>
    %c1_121 = arith.constant 1 : index
    %65 = memref.load %arg4[%c1_121] : memref<8xf32, #tpu.memory_space<smem>>
    %c2_122 = arith.constant 2 : index
    %66 = memref.load %arg4[%c2_122] : memref<8xf32, #tpu.memory_space<smem>>
    %c3_123 = arith.constant 3 : index
    %67 = memref.load %arg4[%c3_123] : memref<8xf32, #tpu.memory_space<smem>>
    %c4_124 = arith.constant 4 : index
    %68 = memref.load %arg4[%c4_124] : memref<8xf32, #tpu.memory_space<smem>>
    %c5_125 = arith.constant 5 : index
    %69 = memref.load %arg4[%c5_125] : memref<8xf32, #tpu.memory_space<smem>>
    %c6_126 = arith.constant 6 : index
    %70 = memref.load %arg4[%c6_126] : memref<8xf32, #tpu.memory_space<smem>>
    %c7_127 = arith.constant 7 : index
    %71 = memref.load %arg4[%c7_127] : memref<8xf32, #tpu.memory_space<smem>>
    %c0_128 = arith.constant 0 : index
    %72 = memref.load %arg5[%c0_128] : memref<8xf32, #tpu.memory_space<smem>>
    %c1_129 = arith.constant 1 : index
    %73 = memref.load %arg5[%c1_129] : memref<8xf32, #tpu.memory_space<smem>>
    %c2_130 = arith.constant 2 : index
    %74 = memref.load %arg5[%c2_130] : memref<8xf32, #tpu.memory_space<smem>>
    %c3_131 = arith.constant 3 : index
    %75 = memref.load %arg5[%c3_131] : memref<8xf32, #tpu.memory_space<smem>>
    %c4_132 = arith.constant 4 : index
    %76 = memref.load %arg5[%c4_132] : memref<8xf32, #tpu.memory_space<smem>>
    %c5_133 = arith.constant 5 : index
    %77 = memref.load %arg5[%c5_133] : memref<8xf32, #tpu.memory_space<smem>>
    %c6_134 = arith.constant 6 : index
    %78 = memref.load %arg5[%c6_134] : memref<8xf32, #tpu.memory_space<smem>>
    %c7_135 = arith.constant 7 : index
    %79 = memref.load %arg5[%c7_135] : memref<8xf32, #tpu.memory_space<smem>>
    %c0_136 = arith.constant 0 : index
    %80 = memref.load %arg6[%c0_136] : memref<1xf32, #tpu.memory_space<smem>>
    %c0_137 = arith.constant 0 : index
    %c0_138 = arith.constant 0 : index
    %c0_139 = arith.constant 0 : index
    %c0_140 = arith.constant 0 : index
    %81 = vector.load %arg7[%c0_137, %c0_138, %c0_139, %c0_140] : memref<1x4x2x128xf32, #tpu.memory_space<vmem>>, vector<1x1x2x128xf32>
    %82 = vector.shape_cast %81 : vector<1x1x2x128xf32> to vector<2x128xf32>
    %c0_141 = arith.constant 0 : index
    %c1_142 = arith.constant 1 : index
    %c0_143 = arith.constant 0 : index
    %c0_144 = arith.constant 0 : index
    %83 = vector.load %arg7[%c0_141, %c1_142, %c0_143, %c0_144] : memref<1x4x2x128xf32, #tpu.memory_space<vmem>>, vector<1x1x2x128xf32>
    %84 = vector.shape_cast %83 : vector<1x1x2x128xf32> to vector<2x128xf32>
    %c0_145 = arith.constant 0 : index
    %c2_146 = arith.constant 2 : index
    %c0_147 = arith.constant 0 : index
    %c0_148 = arith.constant 0 : index
    %85 = vector.load %arg7[%c0_145, %c2_146, %c0_147, %c0_148] : memref<1x4x2x128xf32, #tpu.memory_space<vmem>>, vector<1x1x2x128xf32>
    %86 = vector.shape_cast %85 : vector<1x1x2x128xf32> to vector<2x128xf32>
    %c0_149 = arith.constant 0 : index
    %c3_150 = arith.constant 3 : index
    %c0_151 = arith.constant 0 : index
    %c0_152 = arith.constant 0 : index
    %87 = vector.load %arg7[%c0_149, %c3_150, %c0_151, %c0_152] : memref<1x4x2x128xf32, #tpu.memory_space<vmem>>, vector<1x1x2x128xf32>
    %88 = vector.shape_cast %87 : vector<1x1x2x128xf32> to vector<2x128xf32>
    %c0_153 = arith.constant 0 : index
    %c0_154 = arith.constant 0 : index
    %c0_155 = arith.constant 0 : index
    %c0_156 = arith.constant 0 : index
    %89 = vector.load %arg8[%c0_153, %c0_154, %c0_155, %c0_156] : memref<1x4x2x128xf32, #tpu.memory_space<vmem>>, vector<1x1x2x128xf32>
    %90 = vector.shape_cast %89 : vector<1x1x2x128xf32> to vector<2x128xf32>
    %c0_157 = arith.constant 0 : index
    %c1_158 = arith.constant 1 : index
    %c0_159 = arith.constant 0 : index
    %c0_160 = arith.constant 0 : index
    %91 = vector.load %arg8[%c0_157, %c1_158, %c0_159, %c0_160] : memref<1x4x2x128xf32, #tpu.memory_space<vmem>>, vector<1x1x2x128xf32>
    %92 = vector.shape_cast %91 : vector<1x1x2x128xf32> to vector<2x128xf32>
    %c0_161 = arith.constant 0 : index
    %c2_162 = arith.constant 2 : index
    %c0_163 = arith.constant 0 : index
    %c0_164 = arith.constant 0 : index
    %93 = vector.load %arg8[%c0_161, %c2_162, %c0_163, %c0_164] : memref<1x4x2x128xf32, #tpu.memory_space<vmem>>, vector<1x1x2x128xf32>
    %94 = vector.shape_cast %93 : vector<1x1x2x128xf32> to vector<2x128xf32>
    %c0_165 = arith.constant 0 : index
    %c3_166 = arith.constant 3 : index
    %c0_167 = arith.constant 0 : index
    %c0_168 = arith.constant 0 : index
    %95 = vector.load %arg8[%c0_165, %c3_166, %c0_167, %c0_168] : memref<1x4x2x128xf32, #tpu.memory_space<vmem>>, vector<1x1x2x128xf32>
    %96 = vector.shape_cast %95 : vector<1x1x2x128xf32> to vector<2x128xf32>
    %97 = vector.broadcast %0 : f32 to vector<2x128xf32>
    %98 = arith.mulf %97, %82 : vector<2x128xf32>
    %99 = vector.broadcast %1 : f32 to vector<2x128xf32>
    %100 = arith.mulf %99, %84 : vector<2x128xf32>
    %101 = arith.addf %98, %100 : vector<2x128xf32>
    %102 = vector.broadcast %2 : f32 to vector<2x128xf32>
    %103 = arith.mulf %102, %86 : vector<2x128xf32>
    %104 = arith.addf %101, %103 : vector<2x128xf32>
    %105 = vector.broadcast %3 : f32 to vector<2x128xf32>
    %106 = arith.mulf %105, %88 : vector<2x128xf32>
    %107 = arith.addf %104, %106 : vector<2x128xf32>
    %108 = vector.broadcast %32 : f32 to vector<2x128xf32>
    %109 = arith.mulf %108, %90 : vector<2x128xf32>
    %110 = arith.addf %107, %109 : vector<2x128xf32>
    %111 = vector.broadcast %33 : f32 to vector<2x128xf32>
    %112 = arith.mulf %111, %92 : vector<2x128xf32>
    %113 = arith.addf %110, %112 : vector<2x128xf32>
    %114 = vector.broadcast %34 : f32 to vector<2x128xf32>
    %115 = arith.mulf %114, %94 : vector<2x128xf32>
    %116 = arith.addf %113, %115 : vector<2x128xf32>
    %117 = vector.broadcast %35 : f32 to vector<2x128xf32>
    %118 = arith.mulf %117, %96 : vector<2x128xf32>
    %119 = arith.addf %116, %118 : vector<2x128xf32>
    %120 = vector.broadcast %72 : f32 to vector<2x128xf32>
    %121 = arith.addf %119, %120 : vector<2x128xf32>
    %cst = arith.constant 0.000000e+00 : f32
    %122 = vector.broadcast %cst : f32 to vector<2x128xf32>
    %123 = arith.maximumf %121, %122 : vector<2x128xf32>
    %124 = vector.broadcast %64 : f32 to vector<2x128xf32>
    %125 = arith.mulf %124, %123 : vector<2x128xf32>
    %126 = vector.broadcast %4 : f32 to vector<2x128xf32>
    %127 = arith.mulf %126, %82 : vector<2x128xf32>
    %128 = vector.broadcast %5 : f32 to vector<2x128xf32>
    %129 = arith.mulf %128, %84 : vector<2x128xf32>
    %130 = arith.addf %127, %129 : vector<2x128xf32>
    %131 = vector.broadcast %6 : f32 to vector<2x128xf32>
    %132 = arith.mulf %131, %86 : vector<2x128xf32>
    %133 = arith.addf %130, %132 : vector<2x128xf32>
    %134 = vector.broadcast %7 : f32 to vector<2x128xf32>
    %135 = arith.mulf %134, %88 : vector<2x128xf32>
    %136 = arith.addf %133, %135 : vector<2x128xf32>
    %137 = vector.broadcast %36 : f32 to vector<2x128xf32>
    %138 = arith.mulf %137, %90 : vector<2x128xf32>
    %139 = arith.addf %136, %138 : vector<2x128xf32>
    %140 = vector.broadcast %37 : f32 to vector<2x128xf32>
    %141 = arith.mulf %140, %92 : vector<2x128xf32>
    %142 = arith.addf %139, %141 : vector<2x128xf32>
    %143 = vector.broadcast %38 : f32 to vector<2x128xf32>
    %144 = arith.mulf %143, %94 : vector<2x128xf32>
    %145 = arith.addf %142, %144 : vector<2x128xf32>
    %146 = vector.broadcast %39 : f32 to vector<2x128xf32>
    %147 = arith.mulf %146, %96 : vector<2x128xf32>
    %148 = arith.addf %145, %147 : vector<2x128xf32>
    %149 = vector.broadcast %73 : f32 to vector<2x128xf32>
    %150 = arith.addf %148, %149 : vector<2x128xf32>
    %cst_169 = arith.constant 0.000000e+00 : f32
    %151 = vector.broadcast %cst_169 : f32 to vector<2x128xf32>
    %152 = arith.maximumf %150, %151 : vector<2x128xf32>
    %153 = vector.broadcast %65 : f32 to vector<2x128xf32>
    %154 = arith.mulf %153, %152 : vector<2x128xf32>
    %155 = arith.addf %125, %154 : vector<2x128xf32>
    %156 = vector.broadcast %8 : f32 to vector<2x128xf32>
    %157 = arith.mulf %156, %82 : vector<2x128xf32>
    %158 = vector.broadcast %9 : f32 to vector<2x128xf32>
    %159 = arith.mulf %158, %84 : vector<2x128xf32>
    %160 = arith.addf %157, %159 : vector<2x128xf32>
    %161 = vector.broadcast %10 : f32 to vector<2x128xf32>
    %162 = arith.mulf %161, %86 : vector<2x128xf32>
    %163 = arith.addf %160, %162 : vector<2x128xf32>
    %164 = vector.broadcast %11 : f32 to vector<2x128xf32>
    %165 = arith.mulf %164, %88 : vector<2x128xf32>
    %166 = arith.addf %163, %165 : vector<2x128xf32>
    %167 = vector.broadcast %40 : f32 to vector<2x128xf32>
    %168 = arith.mulf %167, %90 : vector<2x128xf32>
    %169 = arith.addf %166, %168 : vector<2x128xf32>
    %170 = vector.broadcast %41 : f32 to vector<2x128xf32>
    %171 = arith.mulf %170, %92 : vector<2x128xf32>
    %172 = arith.addf %169, %171 : vector<2x128xf32>
    %173 = vector.broadcast %42 : f32 to vector<2x128xf32>
    %174 = arith.mulf %173, %94 : vector<2x128xf32>
    %175 = arith.addf %172, %174 : vector<2x128xf32>
    %176 = vector.broadcast %43 : f32 to vector<2x128xf32>
    %177 = arith.mulf %176, %96 : vector<2x128xf32>
    %178 = arith.addf %175, %177 : vector<2x128xf32>
    %179 = vector.broadcast %74 : f32 to vector<2x128xf32>
    %180 = arith.addf %178, %179 : vector<2x128xf32>
    %cst_170 = arith.constant 0.000000e+00 : f32
    %181 = vector.broadcast %cst_170 : f32 to vector<2x128xf32>
    %182 = arith.maximumf %180, %181 : vector<2x128xf32>
    %183 = vector.broadcast %66 : f32 to vector<2x128xf32>
    %184 = arith.mulf %183, %182 : vector<2x128xf32>
    %185 = arith.addf %155, %184 : vector<2x128xf32>
    %186 = vector.broadcast %12 : f32 to vector<2x128xf32>
    %187 = arith.mulf %186, %82 : vector<2x128xf32>
    %188 = vector.broadcast %13 : f32 to vector<2x128xf32>
    %189 = arith.mulf %188, %84 : vector<2x128xf32>
    %190 = arith.addf %187, %189 : vector<2x128xf32>
    %191 = vector.broadcast %14 : f32 to vector<2x128xf32>
    %192 = arith.mulf %191, %86 : vector<2x128xf32>
    %193 = arith.addf %190, %192 : vector<2x128xf32>
    %194 = vector.broadcast %15 : f32 to vector<2x128xf32>
    %195 = arith.mulf %194, %88 : vector<2x128xf32>
    %196 = arith.addf %193, %195 : vector<2x128xf32>
    %197 = vector.broadcast %44 : f32 to vector<2x128xf32>
    %198 = arith.mulf %197, %90 : vector<2x128xf32>
    %199 = arith.addf %196, %198 : vector<2x128xf32>
    %200 = vector.broadcast %45 : f32 to vector<2x128xf32>
    %201 = arith.mulf %200, %92 : vector<2x128xf32>
    %202 = arith.addf %199, %201 : vector<2x128xf32>
    %203 = vector.broadcast %46 : f32 to vector<2x128xf32>
    %204 = arith.mulf %203, %94 : vector<2x128xf32>
    %205 = arith.addf %202, %204 : vector<2x128xf32>
    %206 = vector.broadcast %47 : f32 to vector<2x128xf32>
    %207 = arith.mulf %206, %96 : vector<2x128xf32>
    %208 = arith.addf %205, %207 : vector<2x128xf32>
    %209 = vector.broadcast %75 : f32 to vector<2x128xf32>
    %210 = arith.addf %208, %209 : vector<2x128xf32>
    %cst_171 = arith.constant 0.000000e+00 : f32
    %211 = vector.broadcast %cst_171 : f32 to vector<2x128xf32>
    %212 = arith.maximumf %210, %211 : vector<2x128xf32>
    %213 = vector.broadcast %67 : f32 to vector<2x128xf32>
    %214 = arith.mulf %213, %212 : vector<2x128xf32>
    %215 = arith.addf %185, %214 : vector<2x128xf32>
    %216 = vector.broadcast %16 : f32 to vector<2x128xf32>
    %217 = arith.mulf %216, %82 : vector<2x128xf32>
    %218 = vector.broadcast %17 : f32 to vector<2x128xf32>
    %219 = arith.mulf %218, %84 : vector<2x128xf32>
    %220 = arith.addf %217, %219 : vector<2x128xf32>
    %221 = vector.broadcast %18 : f32 to vector<2x128xf32>
    %222 = arith.mulf %221, %86 : vector<2x128xf32>
    %223 = arith.addf %220, %222 : vector<2x128xf32>
    %224 = vector.broadcast %19 : f32 to vector<2x128xf32>
    %225 = arith.mulf %224, %88 : vector<2x128xf32>
    %226 = arith.addf %223, %225 : vector<2x128xf32>
    %227 = vector.broadcast %48 : f32 to vector<2x128xf32>
    %228 = arith.mulf %227, %90 : vector<2x128xf32>
    %229 = arith.addf %226, %228 : vector<2x128xf32>
    %230 = vector.broadcast %49 : f32 to vector<2x128xf32>
    %231 = arith.mulf %230, %92 : vector<2x128xf32>
    %232 = arith.addf %229, %231 : vector<2x128xf32>
    %233 = vector.broadcast %50 : f32 to vector<2x128xf32>
    %234 = arith.mulf %233, %94 : vector<2x128xf32>
    %235 = arith.addf %232, %234 : vector<2x128xf32>
    %236 = vector.broadcast %51 : f32 to vector<2x128xf32>
    %237 = arith.mulf %236, %96 : vector<2x128xf32>
    %238 = arith.addf %235, %237 : vector<2x128xf32>
    %239 = vector.broadcast %76 : f32 to vector<2x128xf32>
    %240 = arith.addf %238, %239 : vector<2x128xf32>
    %cst_172 = arith.constant 0.000000e+00 : f32
    %241 = vector.broadcast %cst_172 : f32 to vector<2x128xf32>
    %242 = arith.maximumf %240, %241 : vector<2x128xf32>
    %243 = vector.broadcast %68 : f32 to vector<2x128xf32>
    %244 = arith.mulf %243, %242 : vector<2x128xf32>
    %245 = arith.addf %215, %244 : vector<2x128xf32>
    %246 = vector.broadcast %20 : f32 to vector<2x128xf32>
    %247 = arith.mulf %246, %82 : vector<2x128xf32>
    %248 = vector.broadcast %21 : f32 to vector<2x128xf32>
    %249 = arith.mulf %248, %84 : vector<2x128xf32>
    %250 = arith.addf %247, %249 : vector<2x128xf32>
    %251 = vector.broadcast %22 : f32 to vector<2x128xf32>
    %252 = arith.mulf %251, %86 : vector<2x128xf32>
    %253 = arith.addf %250, %252 : vector<2x128xf32>
    %254 = vector.broadcast %23 : f32 to vector<2x128xf32>
    %255 = arith.mulf %254, %88 : vector<2x128xf32>
    %256 = arith.addf %253, %255 : vector<2x128xf32>
    %257 = vector.broadcast %52 : f32 to vector<2x128xf32>
    %258 = arith.mulf %257, %90 : vector<2x128xf32>
    %259 = arith.addf %256, %258 : vector<2x128xf32>
    %260 = vector.broadcast %53 : f32 to vector<2x128xf32>
    %261 = arith.mulf %260, %92 : vector<2x128xf32>
    %262 = arith.addf %259, %261 : vector<2x128xf32>
    %263 = vector.broadcast %54 : f32 to vector<2x128xf32>
    %264 = arith.mulf %263, %94 : vector<2x128xf32>
    %265 = arith.addf %262, %264 : vector<2x128xf32>
    %266 = vector.broadcast %55 : f32 to vector<2x128xf32>
    %267 = arith.mulf %266, %96 : vector<2x128xf32>
    %268 = arith.addf %265, %267 : vector<2x128xf32>
    %269 = vector.broadcast %77 : f32 to vector<2x128xf32>
    %270 = arith.addf %268, %269 : vector<2x128xf32>
    %cst_173 = arith.constant 0.000000e+00 : f32
    %271 = vector.broadcast %cst_173 : f32 to vector<2x128xf32>
    %272 = arith.maximumf %270, %271 : vector<2x128xf32>
    %273 = vector.broadcast %69 : f32 to vector<2x128xf32>
    %274 = arith.mulf %273, %272 : vector<2x128xf32>
    %275 = arith.addf %245, %274 : vector<2x128xf32>
    %276 = vector.broadcast %24 : f32 to vector<2x128xf32>
    %277 = arith.mulf %276, %82 : vector<2x128xf32>
    %278 = vector.broadcast %25 : f32 to vector<2x128xf32>
    %279 = arith.mulf %278, %84 : vector<2x128xf32>
    %280 = arith.addf %277, %279 : vector<2x128xf32>
    %281 = vector.broadcast %26 : f32 to vector<2x128xf32>
    %282 = arith.mulf %281, %86 : vector<2x128xf32>
    %283 = arith.addf %280, %282 : vector<2x128xf32>
    %284 = vector.broadcast %27 : f32 to vector<2x128xf32>
    %285 = arith.mulf %284, %88 : vector<2x128xf32>
    %286 = arith.addf %283, %285 : vector<2x128xf32>
    %287 = vector.broadcast %56 : f32 to vector<2x128xf32>
    %288 = arith.mulf %287, %90 : vector<2x128xf32>
    %289 = arith.addf %286, %288 : vector<2x128xf32>
    %290 = vector.broadcast %57 : f32 to vector<2x128xf32>
    %291 = arith.mulf %290, %92 : vector<2x128xf32>
    %292 = arith.addf %289, %291 : vector<2x128xf32>
    %293 = vector.broadcast %58 : f32 to vector<2x128xf32>
    %294 = arith.mulf %293, %94 : vector<2x128xf32>
    %295 = arith.addf %292, %294 : vector<2x128xf32>
    %296 = vector.broadcast %59 : f32 to vector<2x128xf32>
    %297 = arith.mulf %296, %96 : vector<2x128xf32>
    %298 = arith.addf %295, %297 : vector<2x128xf32>
    %299 = vector.broadcast %78 : f32 to vector<2x128xf32>
    %300 = arith.addf %298, %299 : vector<2x128xf32>
    %cst_174 = arith.constant 0.000000e+00 : f32
    %301 = vector.broadcast %cst_174 : f32 to vector<2x128xf32>
    %302 = arith.maximumf %300, %301 : vector<2x128xf32>
    %303 = vector.broadcast %70 : f32 to vector<2x128xf32>
    %304 = arith.mulf %303, %302 : vector<2x128xf32>
    %305 = arith.addf %275, %304 : vector<2x128xf32>
    %306 = vector.broadcast %28 : f32 to vector<2x128xf32>
    %307 = arith.mulf %306, %82 : vector<2x128xf32>
    %308 = vector.broadcast %29 : f32 to vector<2x128xf32>
    %309 = arith.mulf %308, %84 : vector<2x128xf32>
    %310 = arith.addf %307, %309 : vector<2x128xf32>
    %311 = vector.broadcast %30 : f32 to vector<2x128xf32>
    %312 = arith.mulf %311, %86 : vector<2x128xf32>
    %313 = arith.addf %310, %312 : vector<2x128xf32>
    %314 = vector.broadcast %31 : f32 to vector<2x128xf32>
    %315 = arith.mulf %314, %88 : vector<2x128xf32>
    %316 = arith.addf %313, %315 : vector<2x128xf32>
    %317 = vector.broadcast %60 : f32 to vector<2x128xf32>
    %318 = arith.mulf %317, %90 : vector<2x128xf32>
    %319 = arith.addf %316, %318 : vector<2x128xf32>
    %320 = vector.broadcast %61 : f32 to vector<2x128xf32>
    %321 = arith.mulf %320, %92 : vector<2x128xf32>
    %322 = arith.addf %319, %321 : vector<2x128xf32>
    %323 = vector.broadcast %62 : f32 to vector<2x128xf32>
    %324 = arith.mulf %323, %94 : vector<2x128xf32>
    %325 = arith.addf %322, %324 : vector<2x128xf32>
    %326 = vector.broadcast %63 : f32 to vector<2x128xf32>
    %327 = arith.mulf %326, %96 : vector<2x128xf32>
    %328 = arith.addf %325, %327 : vector<2x128xf32>
    %329 = vector.broadcast %79 : f32 to vector<2x128xf32>
    %330 = arith.addf %328, %329 : vector<2x128xf32>
    %cst_175 = arith.constant 0.000000e+00 : f32
    %331 = vector.broadcast %cst_175 : f32 to vector<2x128xf32>
    %332 = arith.maximumf %330, %331 : vector<2x128xf32>
    %333 = vector.broadcast %71 : f32 to vector<2x128xf32>
    %334 = arith.mulf %333, %332 : vector<2x128xf32>
    %335 = arith.addf %305, %334 : vector<2x128xf32>
    %336 = vector.broadcast %80 : f32 to vector<2x128xf32>
    %337 = arith.addf %335, %336 : vector<2x128xf32>
    %cst_176 = arith.constant 0.000000e+00 : f32
    %338 = vector.broadcast %cst_176 : f32 to vector<2x128xf32>
    %339 = arith.subf %338, %337 : vector<2x128xf32>
    %340 = math.exp %339 : vector<2x128xf32>
    %cst_177 = arith.constant 1.000000e+00 : f32
    %341 = vector.broadcast %cst_177 : f32 to vector<2x128xf32>
    %342 = arith.addf %341, %340 : vector<2x128xf32>
    %cst_178 = arith.constant 1.000000e+00 : f32
    %343 = vector.broadcast %cst_178 : f32 to vector<2x128xf32>
    %344 = arith.divf %343, %342 : vector<2x128xf32>
    %345 = arith.mulf %90, %344 : vector<2x128xf32>
    %c0_179 = arith.constant 0 : index
    %c0_180 = arith.constant 0 : index
    %c0_181 = arith.constant 0 : index
    %c0_182 = arith.constant 0 : index
    %346 = vector.load %arg9[%c0_179, %c0_180, %c0_181, %c0_182] : memref<1x4x2x128xf32, #tpu.memory_space<vmem>>, vector<1x1x2x128xf32>
    %347 = vector.shape_cast %346 : vector<1x1x2x128xf32> to vector<2x128xf32>
    %348 = vector.shape_cast %345 : vector<2x128xf32> to vector<1x1x2x128xf32>
    tpu.vector_store %arg9[%c0_179, %c0_180, %c0_181, %c0_182], %348 {strides = array<i32>} : memref<1x4x2x128xf32, #tpu.memory_space<vmem>>, vector<1x1x2x128xf32>,
    %349 = arith.mulf %92, %344 : vector<2x128xf32>
    %c0_183 = arith.constant 0 : index
    %c1_184 = arith.constant 1 : index
    %c0_185 = arith.constant 0 : index
    %c0_186 = arith.constant 0 : index
    %350 = vector.load %arg9[%c0_183, %c1_184, %c0_185, %c0_186] : memref<1x4x2x128xf32, #tpu.memory_space<vmem>>, vector<1x1x2x128xf32>
    %351 = vector.shape_cast %350 : vector<1x1x2x128xf32> to vector<2x128xf32>
    %352 = vector.shape_cast %349 : vector<2x128xf32> to vector<1x1x2x128xf32>
    tpu.vector_store %arg9[%c0_183, %c1_184, %c0_185, %c0_186], %352 {strides = array<i32>} : memref<1x4x2x128xf32, #tpu.memory_space<vmem>>, vector<1x1x2x128xf32>,
    %353 = arith.mulf %94, %344 : vector<2x128xf32>
    %c0_187 = arith.constant 0 : index
    %c2_188 = arith.constant 2 : index
    %c0_189 = arith.constant 0 : index
    %c0_190 = arith.constant 0 : index
    %354 = vector.load %arg9[%c0_187, %c2_188, %c0_189, %c0_190] : memref<1x4x2x128xf32, #tpu.memory_space<vmem>>, vector<1x1x2x128xf32>
    %355 = vector.shape_cast %354 : vector<1x1x2x128xf32> to vector<2x128xf32>
    %356 = vector.shape_cast %353 : vector<2x128xf32> to vector<1x1x2x128xf32>
    tpu.vector_store %arg9[%c0_187, %c2_188, %c0_189, %c0_190], %356 {strides = array<i32>} : memref<1x4x2x128xf32, #tpu.memory_space<vmem>>, vector<1x1x2x128xf32>,
    %357 = arith.mulf %96, %344 : vector<2x128xf32>
    %c0_191 = arith.constant 0 : index
    %c3_192 = arith.constant 3 : index
    %c0_193 = arith.constant 0 : index
    %c0_194 = arith.constant 0 : index
    %358 = vector.load %arg9[%c0_191, %c3_192, %c0_193, %c0_194] : memref<1x4x2x128xf32, #tpu.memory_space<vmem>>, vector<1x1x2x128xf32>
    %359 = vector.shape_cast %358 : vector<1x1x2x128xf32> to vector<2x128xf32>
    %360 = vector.shape_cast %357 : vector<2x128xf32> to vector<1x1x2x128xf32>
    tpu.vector_store %arg9[%c0_191, %c3_192, %c0_193, %c0_194], %360 {strides = array<i32>} : memref<1x4x2x128xf32, #tpu.memory_space<vmem>>, vector<1x1x2x128xf32>,
    return
  }
  func.func @transform_0(%arg0: i32, %arg1: i32) -> (i32, i32) {
    %c0_i32 = arith.constant 0 : i32
    %c0_i32_0 = arith.constant 0 : i32
    %c0_i32_1 = arith.constant 0 : i32
    return %c0_i32, %c0_i32_0 : i32, i32
  }
  func.func @transform_1(%arg0: i32, %arg1: i32) -> (i32, i32) {
    %c0_i32 = arith.constant 0 : i32
    %c0_i32_0 = arith.constant 0 : i32
    %c0_i32_1 = arith.constant 0 : i32
    return %c0_i32, %c0_i32_0 : i32, i32
  }
  func.func @transform_2(%arg0: i32, %arg1: i32) -> i32 {
    %c0_i32 = arith.constant 0 : i32
    %c0_i32_0 = arith.constant 0 : i32
    return %c0_i32 : i32
  }
  func.func @transform_3(%arg0: i32, %arg1: i32) -> i32 {
    %c0_i32 = arith.constant 0 : i32
    %c0_i32_0 = arith.constant 0 : i32
    return %c0_i32 : i32
  }
  func.func @transform_4(%arg0: i32, %arg1: i32) -> i32 {
    %c0_i32 = arith.constant 0 : i32
    %c0_i32_0 = arith.constant 0 : i32
    return %c0_i32 : i32
  }
  func.func @transform_5(%arg0: i32, %arg1: i32) -> (i32, i32, i32, i32) {
    %c0_i32 = arith.constant 0 : i32
    %c0_i32_0 = arith.constant 0 : i32
    %c0_i32_1 = arith.constant 0 : i32
    return %arg0, %c0_i32, %arg1, %c0_i32_0 : i32, i32, i32, i32
  }
  func.func @transform_6(%arg0: i32, %arg1: i32) -> (i32, i32, i32, i32) {
    %c0_i32 = arith.constant 0 : i32
    %c0_i32_0 = arith.constant 0 : i32
    %c0_i32_1 = arith.constant 0 : i32
    return %arg0, %c0_i32, %arg1, %c0_i32_0 : i32, i32, i32, i32
  }
  func.func @transform_7(%arg0: i32, %arg1: i32) -> (i32, i32, i32, i32) {
    %c0_i32 = arith.constant 0 : i32
    %c0_i32_0 = arith.constant 0 : i32
    %c0_i32_1 = arith.constant 0 : i32
    return %arg0, %c0_i32, %arg1, %c0_i32_0 : i32, i32, i32, i32
  }
}

</mosaic_0001>

<llo_original>
// kernel: tpu_custom_call.1
$region0: #{tpu_custom_call.1}
  #allocation0 [shape = 'u32[]', space=smem, size = 0x4, offset = 0x4, fixed_abs, tag = 'smem constant byte address 0x4 - core index']
  #allocation1 [shape = 'u32[144,128]{1,0:T(1,128)}', space=vmem, size = 0x12000, scoped, tag = 'internal scratch']
  #allocation2 [shape = 'f32[1]{0:T(128)S(6)}', space=smem, size = 0x200, scoped, tag = 'scoped memory for tpu_custom_call.1']
  %s0 = inlined_call_operand.vmem [shape: f32[8,4], index: 0, kind: input, shape index: {}]
  %s1 = inlined_call_operand.vmem [shape: f32[8,4], index: 1, kind: input, shape index: {}]
  %s2 = inlined_call_operand.vmem [shape: f32[8], index: 2, kind: input, shape index: {}]
  %s3 = inlined_call_operand.hbm [shape: f32[8], index: 3, kind: input, shape index: {}]
  %s4 = inlined_call_operand.<no memory space> [shape: f32[1], index: 4, kind: input, shape index: {}]
  %s5 = inlined_call_operand.vmem [shape: f32[2,4,2,128], index: 5, kind: input, shape index: {}]
  %s6 = inlined_call_operand.vmem [shape: f32[2,4,2,128], index: 6, kind: input, shape index: {}]
  %s7 = inlined_call_operand.hbm [shape: f32[2,4,2,128], index: 7, kind: output, shape index: {}]
  %s8 = sld [smem:[#allocation0]]
  $region77: #{tpu_custom_call.1} parent=0
    _
  %s10 = ssub.s32 1, %s8
  %s11 = scalar_select 0, %s10, %s8
  %12 = sst [smem:[#allocation2]] %s4
  $region1: #{tpu_custom_call.1} parent=0
    #allocation3 [shape = 'u8[4096]{0}', space=smem, size = 0x1000, scoped, tag = 'input window, operand 0, single buffered']
    #allocation4 [shape = 's32[2]{0}', space=sflag, size = 0x8, scoped, tag = 'scoped memory for tpu_custom_call.1']
    #allocation5 [shape = 's32[2]{0}', space=sflag, size = 0x8, scoped, tag = 'scoped memory for tpu_custom_call.1']
    #allocation6 [shape = 's32[2]{0}', space=sflag, size = 0x8, scoped, tag = 'scoped memory for tpu_custom_call.1']
    #allocation7 [shape = 'u8[4096]{0}', space=smem, size = 0x1000, scoped, tag = 'input window, operand 1, single buffered']
    #allocation8 [shape = 's32[1]{0}', space=sflag, size = 0x4, scoped, tag = 'scoped memory for tpu_custom_call.1']
    #allocation9 [shape = 'u8[512]{0}', space=smem, size = 0x200, scoped, tag = 'input window, operand 2, single buffered']
    #allocation10 [shape = 'u8[512]{0}', space=smem, size = 0x200, scoped, tag = 'input window, operand 3, single buffered']
    #allocation11 [shape = 'u8[8192]{0}', space=vmem, size = 0x2000, scoped, tag = 'output window, operand 0']
    %13 = vsyncpa [#allocation6], 0
    %14 = vsyncpa [#allocation8], 0
    %15 = vsyncpa [#allocation5], 0
    %16 = vsyncpa [#allocation4], 0
    %s17 = scalar_lea.sflag [#allocation4], 1
    %18 = vsyncpa %s17, 0
    loop: start=0, step=1, limit=4
    $region2: #{tpu_custom_call.1} parent=1 // loop_pre_header
      _
    $region3: #{tpu_custom_call.1} parent=1 // loop_header
      %s20 = sphi 0, %s24
      %p21 = scmp.ge.s32.totalorder %s20, 4
      %s27 = sphi 0, %s39
      %s28 = sphi 0, %s35
      %s29 = sphi 0, %s27
      %s30 = sphi 0, %s28
      %s31 = sphi 0, %s29
      %s32 = sphi 0, %s30
      %s40 = sphi 0, %s40
      %s42 = sphi 0, %s40
      %s43 = sphi 0, %s42
      %s57 = sphi 0, %s43
      %s61 = sphi 0, %s61
      %s63 = sphi 0, %s61
      %s64 = sphi 0, %s63
      %s78 = sphi 0, %s64
      %s82 = sphi 0, %s82
      %s84 = sphi 0, %s82
      %s85 = sphi 0, %s84
      %s99 = sphi 0, %s85
      %s103 = sphi 0, %s103
      %s105 = sphi 0, %s103
      %s106 = sphi 0, %s105
      %s120 = sphi 0, %s106
      %s124 = sphi 0, %s124
      %s126 = sphi 0, %s124
      %s127 = sphi 0, %s126
      %s141 = sphi 0, %s127
      %s149 = sphi 0, %s151
      %s152 = sphi 0, %s149
      %s153 = sphi 0, %s152
      %s169 = sphi 0, %s153
      %s177 = sphi 0, %s179
      %s180 = sphi 0, %s177
      %s181 = sphi 0, %s180
      %s197 = sphi 0, %s181
      %s205 = sphi 0, %s207
      %s208 = sphi 0, %s205
      %s209 = sphi 0, %s208
      %s225 = sphi 0, %s209
    $region4: #{tpu_custom_call.1} parent=1 // loop_header_branch
      %23 = sbr.rel (%p21) target = $region8
    $region5: #{tpu_custom_call.1} parent=1 // loop_body
      %s25 = ssub.s32 %s20, 1
      %s26 = ssub.s32 %s20, 2
      %s33 = sadd.s32 1, %s28
      %p34 = scmp.ge.s32.totalorder %s33, 1
      %s35 = scalar_select %p34, 0, %s33
      %s36 = sadd.s32 1, %s27
      %s37 = scalar_select %p34, %s36, %s27
      %p38 = scmp.ge.s32.totalorder %s37, 2
      %s39 = scalar_select %p38, 0, %s37
      %s41 = sadd.s32 %s40, 1
      %p44 = scmp.eq.s32.totalorder %s20, 1
      %p45 = scmp.ne.s32.totalorder %s40, %s42
      %p46 = scmp.eq.s32.totalorder %s20, 0
      %p47 = por %p45, %p46
      %p48 = scmp.ne.s32.totalorder %s40, %s42
      %p49 = scmp.eq.s32.totalorder %s25, 1
      %p50 = por %p48, %p49
      %p51 = scmp.ne.s32.totalorder %s42, %s43
      %p52 = scmp.eq.s32.totalorder %s25, 0
      %p53 = por %p51, %p52
      %p54 = scmp.ne.s32.totalorder %s42, %s43
      %p55 = scmp.eq.s32.totalorder %s26, 1
      %p56 = por %p54, %p55
      %p58 = scmp.ne.s32.totalorder %s43, %s57
      %p59 = scmp.eq.s32.totalorder %s26, 0
      %p60 = por %p58, %p59
      %s62 = sadd.s32 %s61, 1
      %p65 = scmp.eq.s32.totalorder %s20, 1
      %p66 = scmp.ne.s32.totalorder %s61, %s63
      %p67 = scmp.eq.s32.totalorder %s20, 0
      %p68 = por %p66, %p67
      %p69 = scmp.ne.s32.totalorder %s61, %s63
      %p70 = scmp.eq.s32.totalorder %s25, 1
      %p71 = por %p69, %p70
      %p72 = scmp.ne.s32.totalorder %s63, %s64
      %p73 = scmp.eq.s32.totalorder %s25, 0
      %p74 = por %p72, %p73
      %p75 = scmp.ne.s32.totalorder %s63, %s64
      %p76 = scmp.eq.s32.totalorder %s26, 1
      %p77 = por %p75, %p76
      %p79 = scmp.ne.s32.totalorder %s64, %s78
      %p80 = scmp.eq.s32.totalorder %s26, 0
      %p81 = por %p79, %p80
      %s83 = sadd.s32 %s82, 1
      %p86 = scmp.eq.s32.totalorder %s20, 1
      %p87 = scmp.ne.s32.totalorder %s82, %s84
      %p88 = scmp.eq.s32.totalorder %s20, 0
      %p89 = por %p87, %p88
      %p90 = scmp.ne.s32.totalorder %s82, %s84
      %p91 = scmp.eq.s32.totalorder %s25, 1
      %p92 = por %p90, %p91
      %p93 = scmp.ne.s32.totalorder %s84, %s85
      %p94 = scmp.eq.s32.totalorder %s25, 0
      %p95 = por %p93, %p94
      %p96 = scmp.ne.s32.totalorder %s84, %s85
      %p97 = scmp.eq.s32.totalorder %s26, 1
      %p98 = por %p96, %p97
      %p100 = scmp.ne.s32.totalorder %s85, %s99
      %p101 = scmp.eq.s32.totalorder %s26, 0
      %p102 = por %p100, %p101
      %s104 = sadd.s32 %s103, 1
      %p107 = scmp.eq.s32.totalorder %s20, 1
      %p108 = scmp.ne.s32.totalorder %s103, %s105
      %p109 = scmp.eq.s32.totalorder %s20, 0
      %p110 = por %p108, %p109
      %p111 = scmp.ne.s32.totalorder %s103, %s105
      %p112 = scmp.eq.s32.totalorder %s25, 1
      %p113 = por %p111, %p112
      %p114 = scmp.ne.s32.totalorder %s105, %s106
      %p115 = scmp.eq.s32.totalorder %s25, 0
      %p116 = por %p114, %p115
      %p117 = scmp.ne.s32.totalorder %s105, %s106
      %p118 = scmp.eq.s32.totalorder %s26, 1
      %p119 = por %p117, %p118
      %p121 = scmp.ne.s32.totalorder %s106, %s120
      %p122 = scmp.eq.s32.totalorder %s26, 0
      %p123 = por %p121, %p122
      %s125 = sadd.s32 %s124, 1
      %p128 = scmp.eq.s32.totalorder %s20, 1
      %p129 = scmp.ne.s32.totalorder %s124, %s126
      %p130 = scmp.eq.s32.totalorder %s20, 0
      %p131 = por %p129, %p130
      %p132 = scmp.ne.s32.totalorder %s124, %s126
      %p133 = scmp.eq.s32.totalorder %s25, 1
      %p134 = por %p132, %p133
      %p135 = scmp.ne.s32.totalorder %s126, %s127
      %p136 = scmp.eq.s32.totalorder %s25, 0
      %p137 = por %p135, %p136
      %p138 = scmp.ne.s32.totalorder %s126, %s127
      %p139 = scmp.eq.s32.totalorder %s26, 1
      %p140 = por %p138, %p139
      %p142 = scmp.ne.s32.totalorder %s127, %s141
      %p143 = scmp.eq.s32.totalorder %s26, 0
      %p144 = por %p142, %p143
      %s145 = ssub.s32 %s27, %s39
      %s146 = ssub.s32 %s28, %s35
      %s147 = sor.u32 %s145, %s146
      %p148 = scmp.eq.s32.totalorder %s147, 0
      %s150 = sadd.s32 %s149, 1
      %s151 = scalar_select %p148, %s149, %s150
      %p154 = pneg %p148
      %p155 = scmp.eq.s32.totalorder %s20, 1
      %p156 = por %p154, %p155
      %p157 = scmp.ne.s32.totalorder %s149, %s152
      %p158 = scmp.eq.s32.totalorder %s20, 0
      %p159 = por %p157, %p158
      %p160 = scmp.ne.s32.totalorder %s149, %s152
      %p161 = scmp.eq.s32.totalorder %s25, 1
      %p162 = por %p160, %p161
      %p163 = scmp.ne.s32.totalorder %s152, %s153
      %p164 = scmp.eq.s32.totalorder %s25, 0
      %p165 = por %p163, %p164
      %p166 = scmp.ne.s32.totalorder %s152, %s153
      %p167 = scmp.eq.s32.totalorder %s26, 1
      %p168 = por %p166, %p167
      %p170 = scmp.ne.s32.totalorder %s153, %s169
      %p171 = scmp.eq.s32.totalorder %s26, 0
      %p172 = por %p170, %p171
      %s173 = ssub.s32 %s27, %s39
      %s174 = ssub.s32 %s28, %s35
      %s175 = sor.u32 %s173, %s174
      %p176 = scmp.eq.s32.totalorder %s175, 0
      %s178 = sadd.s32 %s177, 1
      %s179 = scalar_select %p176, %s177, %s178
      %p182 = pneg %p176
      %p183 = scmp.eq.s32.totalorder %s20, 1
      %p184 = por %p182, %p183
      %p185 = scmp.ne.s32.totalorder %s177, %s180
      %p186 = scmp.eq.s32.totalorder %s20, 0
      %p187 = por %p185, %p186
      %p188 = scmp.ne.s32.totalorder %s177, %s180
      %p189 = scmp.eq.s32.totalorder %s25, 1
      %p190 = por %p188, %p189
      %p191 = scmp.ne.s32.totalorder %s180, %s181
      %p192 = scmp.eq.s32.totalorder %s25, 0
      %p193 = por %p191, %p192
      %p194 = scmp.ne.s32.totalorder %s180, %s181
      %p195 = scmp.eq.s32.totalorder %s26, 1
      %p196 = por %p194, %p195
      %p198 = scmp.ne.s32.totalorder %s181, %s197
      %p199 = scmp.eq.s32.totalorder %s26, 0
      %p200 = por %p198, %p199
      %s201 = ssub.s32 %s27, %s39
      %s202 = ssub.s32 %s28, %s35
      %s203 = sor.u32 %s201, %s202
      %p204 = scmp.eq.s32.totalorder %s203, 0
      %s206 = sadd.s32 %s205, 1
      %s207 = scalar_select %p204, %s205, %s206
      %p210 = pneg %p204
      %p211 = scmp.eq.s32.totalorder %s20, 1
      %p212 = por %p210, %p211
      %p213 = scmp.ne.s32.totalorder %s205, %s208
      %p214 = scmp.eq.s32.totalorder %s20, 0
      %p215 = por %p213, %p214
      %p216 = scmp.ne.s32.totalorder %s205, %s208
      %p217 = scmp.eq.s32.totalorder %s25, 1
      %p218 = por %p216, %p217
      %p219 = scmp.ne.s32.totalorder %s208, %s209
      %p220 = scmp.eq.s32.totalorder %s25, 0
      %p221 = por %p219, %p220
      %p222 = scmp.ne.s32.totalorder %s208, %s209
      %p223 = scmp.eq.s32.totalorder %s26, 1
      %p224 = por %p222, %p223
      %p226 = scmp.ne.s32.totalorder %s209, %s225
      %p227 = scmp.eq.s32.totalorder %s26, 0
      %p228 = por %p226, %p227
      %p229 = scmp.le.s32.totalorder 1, %s20
      %p230 = scmp.lt.s32.totalorder %s20, 3
      %p231 = pnand %p229, %p230
      %p232 = pneg %p231
      // Predicated region
      $region9: #{tpu_custom_call.1} parent=5 // pred_check
        _
      $region10: #{tpu_custom_call.1} parent=5 // pred_check_branch
        %234 = sbr.rel (%p231) target = $region12
      $region11: #{tpu_custom_call.1} parent=5 // pred_region
        %s235 = ssub.s32 %s20, 1
        // Predicated region
        $region13: #{tpu_custom_call.1} parent=11 // pred_check
          %p236 = pneg %p53
        $region14: #{tpu_custom_call.1} parent=11 // pred_check_branch
          %238 = sbr.rel (%p236) target = $region16
        $region15: #{tpu_custom_call.1} parent=11 // pred_region
          %s240 = ssub.s32 128, 128
          %241 = vsyncadd [#allocation6], %s240
          %s243 = sshll.u32 %s0, 4
          %s244 = int_to_ptr.vmem [resolvable:$true] %s243
          %246 = dma.vmem_to_smem %s244, 128, [#allocation3], [#allocation6]
        $region16: #{tpu_custom_call.1} parent=11 // pred_fallthru
          _
        // Predicated region
        $region17: #{tpu_custom_call.1} parent=11 // pred_check
          %p247 = pneg %p74
        $region18: #{tpu_custom_call.1} parent=11 // pred_check_branch
          %249 = sbr.rel (%p247) target = $region20
        $region19: #{tpu_custom_call.1} parent=11 // pred_region
          %s251 = ssub.s32 128, 128
          %252 = vsyncadd [#allocation8], %s251
          %s254 = sshll.u32 %s1, 4
          %s255 = int_to_ptr.vmem [resolvable:$true] %s254
          %257 = dma.vmem_to_smem %s255, 128, [#allocation7], [#allocation8]
        $region20: #{tpu_custom_call.1} parent=11 // pred_fallthru
          _
        // Predicated region
        $region21: #{tpu_custom_call.1} parent=11 // pred_check
          %p258 = pneg %p95
        $region22: #{tpu_custom_call.1} parent=11 // pred_check_branch
          %260 = sbr.rel (%p258) target = $region24
        $region23: #{tpu_custom_call.1} parent=11 // pred_region
          %s262 = ssub.s32 16, 16
          %263 = vsyncadd [#allocation8], %s262
          %s265 = sshll.u32 %s2, 4
          %s266 = int_to_ptr.vmem [resolvable:$true] %s265
          %268 = dma.vmem_to_smem %s266, 16, [#allocation9], [#allocation8]
        $region24: #{tpu_custom_call.1} parent=11 // pred_fallthru
          _
        // Predicated region
        $region25: #{tpu_custom_call.1} parent=11 // pred_check
          %p269 = pneg %p116
        $region26: #{tpu_custom_call.1} parent=11 // pred_check_branch
          %271 = sbr.rel (%p269) target = $region28
        $region27: #{tpu_custom_call.1} parent=11 // pred_region
          %s273 = ssub.s32 16, 16
          %274 = vsyncadd [#allocation5], %s273
          %277 = dma.hbm_to_smem %s3, 16, [#allocation10], [#allocation5]
        $region28: #{tpu_custom_call.1} parent=11 // pred_fallthru
          _
        // Predicated region
        $region29: #{tpu_custom_call.1} parent=11 // pred_check
          %p278 = pneg %p137
        $region30: #{tpu_custom_call.1} parent=11 // pred_check_branch
          %280 = sbr.rel (%p278) target = $region32
        $region31: #{tpu_custom_call.1} parent=11 // pred_region
          _
        $region32: #{tpu_custom_call.1} parent=11 // pred_fallthru
          _
      $region12: #{tpu_custom_call.1} parent=5 // pred_fallthru
        _
      %p281 = scmp.lt.s32.totalorder %s20, 2
      // Predicated region
      $region33: #{tpu_custom_call.1} parent=5 // pred_check
        %p282 = pneg %p281
      $region34: #{tpu_custom_call.1} parent=5 // pred_check_branch
        %284 = sbr.rel (%p282) target = $region36
      $region35: #{tpu_custom_call.1} parent=5 // pred_region
        // Predicated region
        $region37: #{tpu_custom_call.1} parent=35 // pred_check
          %p285 = pneg %p159
        $region38: #{tpu_custom_call.1} parent=35 // pred_check_branch
          %287 = sbr.rel (%p285) target = $region40
        $region39: #{tpu_custom_call.1} parent=35 // pred_region
          %p288 = scmp.lt.s32.totalorder %s27, 1
          %s289 = scalar_select %p288, %s27, 1
          %p290 = scmp.lt.s32.totalorder %s28, 0
          %s291 = scalar_select %p290, %s28, 0
          %s292 = smul.addr %s289, 4
          %s293 = sadd.s32 %s291, %s292
          %s294 = smul.addr %s293, 2
          %s295 = scalar_lea.vmem %s5, %s294
        $region40: #{tpu_custom_call.1} parent=35 // pred_fallthru
          _
        // Predicated region
        $region41: #{tpu_custom_call.1} parent=35 // pred_check
          %p296 = pneg %p187
        $region42: #{tpu_custom_call.1} parent=35 // pred_check_branch
          %298 = sbr.rel (%p296) target = $region44
        $region43: #{tpu_custom_call.1} parent=35 // pred_region
          %p299 = scmp.lt.s32.totalorder %s27, 1
          %s300 = scalar_select %p299, %s27, 1
          %p301 = scmp.lt.s32.totalorder %s28, 0
          %s302 = scalar_select %p301, %s28, 0
          %s303 = smul.addr %s300, 4
          %s304 = sadd.s32 %s302, %s303
          %s305 = smul.addr %s304, 2
          %s306 = scalar_lea.vmem %s6, %s305
        $region44: #{tpu_custom_call.1} parent=35 // pred_fallthru
          _
      $region36: #{tpu_custom_call.1} parent=5 // pred_fallthru
        _
      %p307 = scmp.le.s32.totalorder 1, %s20
      %p308 = scmp.lt.s32.totalorder %s20, 3
      %p309 = pnand %p307, %p308
      %p310 = pneg %p309
      // Predicated region
      $region45: #{tpu_custom_call.1} parent=5 // pred_check
        _
      $region46: #{tpu_custom_call.1} parent=5 // pred_check_branch
        %312 = sbr.rel (%p309) target = $region48
      $region47: #{tpu_custom_call.1} parent=5 // pred_region
        %s313 = ssub.s32 %s20, 1
        // Predicated region
        $region49: #{tpu_custom_call.1} parent=47 // pred_check
          %p314 = pneg %p53
        $region50: #{tpu_custom_call.1} parent=47 // pred_check_branch
          %316 = sbr.rel (%p314) target = $region52
        $region51: #{tpu_custom_call.1} parent=47 // pred_region
          %317 = dma.done [#allocation6], 128
        $region52: #{tpu_custom_call.1} parent=47 // pred_fallthru
          _
        // Predicated region
        $region53: #{tpu_custom_call.1} parent=47 // pred_check
          %p318 = pneg %p74
        $region54: #{tpu_custom_call.1} parent=47 // pred_check_branch
          %320 = sbr.rel (%p318) target = $region56
        $region55: #{tpu_custom_call.1} parent=47 // pred_region
          %321 = dma.done [#allocation8], 128
        $region56: #{tpu_custom_call.1} parent=47 // pred_fallthru
          _
        // Predicated region
        $region57: #{tpu_custom_call.1} parent=47 // pred_check
          %p322 = pneg %p95
        $region58: #{tpu_custom_call.1} parent=47 // pred_check_branch
          %324 = sbr.rel (%p322) target = $region60
        $region59: #{tpu_custom_call.1} parent=47 // pred_region
          %325 = dma.done [#allocation8], 16
        $region60: #{tpu_custom_call.1} parent=47 // pred_fallthru
          _
        // Predicated region
        $region61: #{tpu_custom_call.1} parent=47 // pred_check
          %p326 = pneg %p116
        $region62: #{tpu_custom_call.1} parent=47 // pred_check_branch
          %328 = sbr.rel (%p326) target = $region64
        $region63: #{tpu_custom_call.1} parent=47 // pred_region
          %329 = dma.done [#allocation5], 16
        $region64: #{tpu_custom_call.1} parent=47 // pred_fallthru
          _
        %330 = sfence
        %p331 = pneg %p53
        %p332 = pneg %p50
        %p333 = pneg %p74
        %p334 = pneg %p71
        %p335 = pneg %p95
        %p336 = pneg %p92
        %p337 = pneg %p116
        %p338 = pneg %p113
        %p339 = pneg %p137
        %p340 = pneg %p134
        %p341 = scmp.lt.s32.totalorder %s29, 1
        %s342 = scalar_select %p341, %s29, 1
        %p343 = scmp.lt.s32.totalorder %s30, 0
        %s344 = scalar_select %p343, %s30, 0
        %s345 = smul.addr %s342, 4
        %s346 = sadd.s32 %s344, %s345
        %s347 = smul.addr %s346, 2
        %s348 = scalar_lea.vmem %s5, %s347
        %p349 = pneg %p165
        %p350 = pneg %p162
        %p351 = scmp.lt.s32.totalorder %s29, 1
        %s352 = scalar_select %p351, %s29, 1
        %p353 = scmp.lt.s32.totalorder %s30, 0
        %s354 = scalar_select %p353, %s30, 0
        %s355 = smul.addr %s352, 4
        %s356 = sadd.s32 %s354, %s355
        %s357 = smul.addr %s356, 2
        %s358 = scalar_lea.vmem %s6, %s357
        %p359 = pneg %p193
        %p360 = pneg %p190
        %p361 = pneg %p221
        %p362 = pneg %p218
        %s363 = sand.u32 %s208, 1
        %s364 = scalar_lea.sflag [#allocation4], %s363
        %s365 = sand.u32 %s208, 1
        %s366 = smul.addr %s365, 8
        %s367 = scalar_lea.vmem [#allocation11], %s366
        %p368 = scmp.lt.s32.totalorder %s29, 1
        %s369 = scalar_select %p368, %s29, 1
        %p370 = scmp.lt.s32.totalorder %s30, 0
        %s371 = scalar_select %p370, %s30, 0
        %s372 = smul.addr %s369, 4
        %s373 = sadd.s32 %s371, %s372
        %s374 = smul.addr %s373, 2
        %s375 = scalar_lea.vmem %s5, %s374
        %p376 = scmp.lt.s32.totalorder %s29, 1
        %s377 = scalar_select %p376, %s29, 1
        %p378 = scmp.lt.s32.totalorder %s30, 0
        %s379 = scalar_select %p378, %s30, 0
        %s380 = smul.addr %s377, 4
        %s381 = sadd.s32 %s379, %s380
        %s382 = smul.addr %s381, 2
        %s383 = scalar_lea.vmem %s6, %s382
        %s384 = sld [smem:[#allocation3]]
        %s385 = sld [smem:[#allocation3 + $0x1]]
        %s386 = sld [smem:[#allocation3 + $0x2]]
        %s387 = sld [smem:[#allocation3 + $0x3]]
        %s388 = sld [smem:[#allocation3 + $0x80]]
        %s389 = sld [smem:[#allocation3 + $0x81]]
        %s390 = sld [smem:[#allocation3 + $0x82]]
        %s391 = sld [smem:[#allocation3 + $0x83]]
        %s392 = sld [smem:[#allocation3 + $0x100]]
        %s393 = sld [smem:[#allocation3 + $0x101]]
        %s394 = sld [smem:[#allocation3 + $0x102]]
        %s395 = sld [smem:[#allocation3 + $0x103]]
        %s396 = sld [smem:[#allocation3 + $0x180]]
        %s397 = sld [smem:[#allocation3 + $0x181]]
        %s398 = sld [smem:[#allocation3 + $0x182]]
        %s399 = sld [smem:[#allocation3 + $0x183]]
        %s400 = sld [smem:[#allocation3 + $0x200]]
        %s401 = sld [smem:[#allocation3 + $0x201]]
        %s402 = sld [smem:[#allocation3 + $0x202]]
        %s403 = sld [smem:[#allocation3 + $0x203]]
        %s404 = sld [smem:[#allocation3 + $0x280]]
        %s405 = sld [smem:[#allocation3 + $0x281]]
        %s406 = sld [smem:[#allocation3 + $0x282]]
        %s407 = sld [smem:[#allocation3 + $0x283]]
        %s408 = sld [smem:[#allocation3 + $0x300]]
        %s409 = sld [smem:[#allocation3 + $0x301]]
        %s410 = sld [smem:[#allocation3 + $0x302]]
        %s411 = sld [smem:[#allocation3 + $0x303]]
        %s412 = sld [smem:[#allocation3 + $0x380]]
        %s413 = sld [smem:[#allocation3 + $0x381]]
        %s414 = sld [smem:[#allocation3 + $0x382]]
        %s415 = sld [smem:[#allocation3 + $0x383]]
        %s416 = sld [smem:[#allocation7]]
        %s417 = sld [smem:[#allocation7 + $0x1]]
        %s418 = sld [smem:[#allocation7 + $0x2]]
        %s419 = sld [smem:[#allocation7 + $0x3]]
        %s420 = sld [smem:[#allocation7 + $0x80]]
        %s421 = sld [smem:[#allocation7 + $0x81]]
        %s422 = sld [smem:[#allocation7 + $0x82]]
        %s423 = sld [smem:[#allocation7 + $0x83]]
        %s424 = sld [smem:[#allocation7 + $0x100]]
        %s425 = sld [smem:[#allocation7 + $0x101]]
        %s426 = sld [smem:[#allocation7 + $0x102]]
        %s427 = sld [smem:[#allocation7 + $0x103]]
        %s428 = sld [smem:[#allocation7 + $0x180]]
        %s429 = sld [smem:[#allocation7 + $0x181]]
        %s430 = sld [smem:[#allocation7 + $0x182]]
        %s431 = sld [smem:[#allocation7 + $0x183]]
        %s432 = sld [smem:[#allocation7 + $0x200]]
        %s433 = sld [smem:[#allocation7 + $0x201]]
        %s434 = sld [smem:[#allocation7 + $0x202]]
        %s435 = sld [smem:[#allocation7 + $0x203]]
        %s436 = sld [smem:[#allocation7 + $0x280]]
        %s437 = sld [smem:[#allocation7 + $0x281]]
        %s438 = sld [smem:[#allocation7 + $0x282]]
        %s439 = sld [smem:[#allocation7 + $0x283]]
        %s440 = sld [smem:[#allocation7 + $0x300]]
        %s441 = sld [smem:[#allocation7 + $0x301]]
        %s442 = sld [smem:[#allocation7 + $0x302]]
        %s443 = sld [smem:[#allocation7 + $0x303]]
        %s444 = sld [smem:[#allocation7 + $0x380]]
        %s445 = sld [smem:[#allocation7 + $0x381]]
        %s446 = sld [smem:[#allocation7 + $0x382]]
        %s447 = sld [smem:[#allocation7 + $0x383]]
        %s448 = sld [smem:[#allocation9]]
        %s449 = sld [smem:[#allocation9 + $0x1]]
        %s450 = sld [smem:[#allocation9 + $0x2]]
        %s451 = sld [smem:[#allocation9 + $0x3]]
        %s452 = sld [smem:[#allocation9 + $0x4]]
        %s453 = sld [smem:[#allocation9 + $0x5]]
        %s454 = sld [smem:[#allocation9 + $0x6]]
        %s455 = sld [smem:[#allocation9 + $0x7]]
        %s456 = sld [smem:[#allocation10]]
        %s457 = sld [smem:[#allocation10 + $0x1]]
        %s458 = sld [smem:[#allocation10 + $0x2]]
        %s459 = sld [smem:[#allocation10 + $0x3]]
        %s460 = sld [smem:[#allocation10 + $0x4]]
        %s461 = sld [smem:[#allocation10 + $0x5]]
        %s462 = sld [smem:[#allocation10 + $0x6]]
        %s463 = sld [smem:[#allocation10 + $0x7]]
        %s464 = sld [smem:[#allocation2]]
        %v465 = vld [vmem:[%s375] sm:$0x3]
        %s466 = scalar_lea.vmem %s375, 2
        %v467 = vld [vmem:[%s466] sm:$0x3]
        %s468 = scalar_lea.vmem %s375, 4
        %v469 = vld [vmem:[%s468] sm:$0x3]
        %s470 = scalar_lea.vmem %s375, 6
        %v471 = vld [vmem:[%s470] sm:$0x3]
        %v472 = vld [vmem:[%s383] sm:$0x3]
        %s473 = scalar_lea.vmem %s383, 2
        %v474 = vld [vmem:[%s473] sm:$0x3]
        %s475 = scalar_lea.vmem %s383, 4
        %v476 = vld [vmem:[%s475] sm:$0x3]
        %s477 = scalar_lea.vmem %s383, 6
        %v478 = vld [vmem:[%s477] sm:$0x3]
        %v479 = vstv %s384
        %v480 = vmul.f32 %v479, %v465
        %v481 = vstv %s385
        %v482 = vmul.f32 %v481, %v467
        %v483 = vadd.f32 %v480, %v482
        %v484 = vstv %s386
        %v485 = vmul.f32 %v484, %v469
        %v486 = vadd.f32 %v483, %v485
        %v487 = vstv %s387
        %v488 = vmul.f32 %v487, %v471
        %v489 = vadd.f32 %v486, %v488
        %v490 = vstv %s416
        %v491 = vmul.f32 %v490, %v472
        %v492 = vadd.f32 %v489, %v491
        %v493 = vstv %s417
        %v494 = vmul.f32 %v493, %v474
        %v495 = vadd.f32 %v492, %v494
        %v496 = vstv %s418
        %v497 = vmul.f32 %v496, %v476
        %v498 = vadd.f32 %v495, %v497
        %v499 = vstv %s419
        %v500 = vmul.f32 %v499, %v478
        %v501 = vadd.f32 %v498, %v500
        %v502 = vstv %s456
        %v503 = vadd.f32 %v501, %v502
        %v504 = vmax.f32 %v503, 0.0
        %v505 = vstv %s448
        %v506 = vmul.f32 %v505, %v504
        %v507 = vstv %s388
        %v508 = vmul.f32 %v507, %v465
        %v509 = vstv %s389
        %v510 = vmul.f32 %v509, %v467
        %v511 = vadd.f32 %v508, %v510
        %v512 = vstv %s390
        %v513 = vmul.f32 %v512, %v469
        %v514 = vadd.f32 %v511, %v513
        %v515 = vstv %s391
        %v516 = vmul.f32 %v515, %v471
        %v517 = vadd.f32 %v514, %v516
        %v518 = vstv %s420
        %v519 = vmul.f32 %v518, %v472
        %v520 = vadd.f32 %v517, %v519
        %v521 = vstv %s421
        %v522 = vmul.f32 %v521, %v474
        %v523 = vadd.f32 %v520, %v522
        %v524 = vstv %s422
        %v525 = vmul.f32 %v524, %v476
        %v526 = vadd.f32 %v523, %v525
        %v527 = vstv %s423
        %v528 = vmul.f32 %v527, %v478
        %v529 = vadd.f32 %v526, %v528
        %v530 = vstv %s457
        %v531 = vadd.f32 %v529, %v530
        %v532 = vmax.f32 %v531, 0.0
        %v533 = vstv %s449
        %v534 = vmul.f32 %v533, %v532
        %v535 = vadd.f32 %v506, %v534
        %v536 = vstv %s392
        %v537 = vmul.f32 %v536, %v465
        %v538 = vstv %s393
        %v539 = vmul.f32 %v538, %v467
        %v540 = vadd.f32 %v537, %v539
        %v541 = vstv %s394
        %v542 = vmul.f32 %v541, %v469
        %v543 = vadd.f32 %v540, %v542
        %v544 = vstv %s395
        %v545 = vmul.f32 %v544, %v471
        %v546 = vadd.f32 %v543, %v545
        %v547 = vstv %s424
        %v548 = vmul.f32 %v547, %v472
        %v549 = vadd.f32 %v546, %v548
        %v550 = vstv %s425
        %v551 = vmul.f32 %v550, %v474
        %v552 = vadd.f32 %v549, %v551
        %v553 = vstv %s426
        %v554 = vmul.f32 %v553, %v476
        %v555 = vadd.f32 %v552, %v554
        %v556 = vstv %s427
        %v557 = vmul.f32 %v556, %v478
        %v558 = vadd.f32 %v555, %v557
        %v559 = vstv %s458
        %v560 = vadd.f32 %v558, %v559
        %v561 = vmax.f32 %v560, 0.0
        %v562 = vstv %s450
        %v563 = vmul.f32 %v562, %v561
        %v564 = vadd.f32 %v535, %v563
        %v565 = vstv %s396
        %v566 = vmul.f32 %v565, %v465
        %v567 = vstv %s397
        %v568 = vmul.f32 %v567, %v467
        %v569 = vadd.f32 %v566, %v568
        %v570 = vstv %s398
        %v571 = vmul.f32 %v570, %v469
        %v572 = vadd.f32 %v569, %v571
        %v573 = vstv %s399
        %v574 = vmul.f32 %v573, %v471
        %v575 = vadd.f32 %v572, %v574
        %v576 = vstv %s428
        %v577 = vmul.f32 %v576, %v472
        %v578 = vadd.f32 %v575, %v577
        %v579 = vstv %s429
        %v580 = vmul.f32 %v579, %v474
        %v581 = vadd.f32 %v578, %v580
        %v582 = vstv %s430
        %v583 = vmul.f32 %v582, %v476
        %v584 = vadd.f32 %v581, %v583
        %v585 = vstv %s431
        %v586 = vmul.f32 %v585, %v478
        %v587 = vadd.f32 %v584, %v586
        %v588 = vstv %s459
        %v589 = vadd.f32 %v587, %v588
        %v590 = vmax.f32 %v589, 0.0
        %v591 = vstv %s451
        %v592 = vmul.f32 %v591, %v590
        %v593 = vadd.f32 %v564, %v592
        %v594 = vstv %s400
        %v595 = vmul.f32 %v594, %v465
        %v596 = vstv %s401
        %v597 = vmul.f32 %v596, %v467
        %v598 = vadd.f32 %v595, %v597
        %v599 = vstv %s402
        %v600 = vmul.f32 %v599, %v469
        %v601 = vadd.f32 %v598, %v600
        %v602 = vstv %s403
        %v603 = vmul.f32 %v602, %v471
        %v604 = vadd.f32 %v601, %v603
        %v605 = vstv %s432
        %v606 = vmul.f32 %v605, %v472
        %v607 = vadd.f32 %v604, %v606
        %v608 = vstv %s433
        %v609 = vmul.f32 %v608, %v474
        %v610 = vadd.f32 %v607, %v609
        %v611 = vstv %s434
        %v612 = vmul.f32 %v611, %v476
        %v613 = vadd.f32 %v610, %v612
        %v614 = vstv %s435
        %v615 = vmul.f32 %v614, %v478
        %v616 = vadd.f32 %v613, %v615
        %v617 = vstv %s460
        %v618 = vadd.f32 %v616, %v617
        %v619 = vmax.f32 %v618, 0.0
        %v620 = vstv %s452
        %v621 = vmul.f32 %v620, %v619
        %v622 = vadd.f32 %v593, %v621
        %v623 = vstv %s404
        %v624 = vmul.f32 %v623, %v465
        %v625 = vstv %s405
        %v626 = vmul.f32 %v625, %v467
        %v627 = vadd.f32 %v624, %v626
        %v628 = vstv %s406
        %v629 = vmul.f32 %v628, %v469
        %v630 = vadd.f32 %v627, %v629
        %v631 = vstv %s407
        %v632 = vmul.f32 %v631, %v471
        %v633 = vadd.f32 %v630, %v632
        %v634 = vstv %s436
        %v635 = vmul.f32 %v634, %v472
        %v636 = vadd.f32 %v633, %v635
        %v637 = vstv %s437
        %v638 = vmul.f32 %v637, %v474
        %v639 = vadd.f32 %v636, %v638
        %v640 = vstv %s438
        %v641 = vmul.f32 %v640, %v476
        %v642 = vadd.f32 %v639, %v641
        %v643 = vstv %s439
        %v644 = vmul.f32 %v643, %v478
        %v645 = vadd.f32 %v642, %v644
        %v646 = vstv %s461
        %v647 = vadd.f32 %v645, %v646
        %v648 = vmax.f32 %v647, 0.0
        %v649 = vstv %s453
        %v650 = vmul.f32 %v649, %v648
        %v651 = vadd.f32 %v622, %v650
        %v652 = vstv %s408
        %v653 = vmul.f32 %v652, %v465
        %v654 = vstv %s409
        %v655 = vmul.f32 %v654, %v467
        %v656 = vadd.f32 %v653, %v655
        %v657 = vstv %s410
        %v658 = vmul.f32 %v657, %v469
        %v659 = vadd.f32 %v656, %v658
        %v660 = vstv %s411
        %v661 = vmul.f32 %v660, %v471
        %v662 = vadd.f32 %v659, %v661
        %v663 = vstv %s440
        %v664 = vmul.f32 %v663, %v472
        %v665 = vadd.f32 %v662, %v664
        %v666 = vstv %s441
        %v667 = vmul.f32 %v666, %v474
        %v668 = vadd.f32 %v665, %v667
        %v669 = vstv %s442
        %v670 = vmul.f32 %v669, %v476
        %v671 = vadd.f32 %v668, %v670
        %v672 = vstv %s443
        %v673 = vmul.f32 %v672, %v478
        %v674 = vadd.f32 %v671, %v673
        %v675 = vstv %s462
        %v676 = vadd.f32 %v674, %v675
        %v677 = vmax.f32 %v676, 0.0
        %v678 = vstv %s454
        %v679 = vmul.f32 %v678, %v677
        %v680 = vadd.f32 %v651, %v679
        %v681 = vstv %s412
        %v682 = vmul.f32 %v681, %v465
        %v683 = vstv %s413
        %v684 = vmul.f32 %v683, %v467
        %v685 = vadd.f32 %v682, %v684
        %v686 = vstv %s414
        %v687 = vmul.f32 %v686, %v469
        %v688 = vadd.f32 %v685, %v687
        %v689 = vstv %s415
        %v690 = vmul.f32 %v689, %v471
        %v691 = vadd.f32 %v688, %v690
        %v692 = vstv %s444
        %v693 = vmul.f32 %v692, %v472
        %v694 = vadd.f32 %v691, %v693
        %v695 = vstv %s445
        %v696 = vmul.f32 %v695, %v474
        %v697 = vadd.f32 %v694, %v696
        %v698 = vstv %s446
        %v699 = vmul.f32 %v698, %v476
        %v700 = vadd.f32 %v697, %v699
        %v701 = vstv %s447
        %v702 = vmul.f32 %v701, %v478
        %v703 = vadd.f32 %v700, %v702
        %v704 = vstv %s463
        %v705 = vadd.f32 %v703, %v704
        %v706 = vmax.f32 %v705, 0.0
        %v707 = vstv %s455
        %v708 = vmul.f32 %v707, %v706
        %v709 = vadd.f32 %v680, %v708
        %v710 = vstv %s464
        %v711 = vadd.f32 %v709, %v710
        %v712 = vsub.f32 0.0, %v711
        %v713 = vmul.f32 %v712, 1.442695
        %v714 = vpow.pop %v713
        %v715 = vadd.f32 %v714, 1.0
        %v716 = vrcp.pop %v715
        %v717 = vmul.f32 1.0, %v716
        %v718 = vmul.f32 %v472, %v717
        %719 = vst [vmem:[%s367] sm:$0x3] %v718
        %v720 = vmul.f32 %v474, %v717
        %s721 = scalar_lea.vmem %s367, 2 [#allocation11]
        %722 = vst [vmem:[%s721] sm:$0x3] %v720
        %v723 = vmul.f32 %v476, %v717
        %s724 = scalar_lea.vmem %s367, 4 [#allocation11]
        %725 = vst [vmem:[%s724] sm:$0x3] %v723
        %v726 = vmul.f32 %v478, %v717
        %s727 = scalar_lea.vmem %s367, 6 [#allocation11]
        %728 = vst [vmem:[%s727] sm:$0x3] %v726
        %s729 = sand.u32 %s208, 1
        %s730 = scalar_lea.sflag [#allocation4], %s729
        %s731 = sand.u32 %s208, 1
        %s732 = smul.addr %s731, 8
        %s733 = scalar_lea.vmem [#allocation11], %s732
        // Predicated region
        $region65: #{tpu_custom_call.1} parent=47 // pred_check
          %p734 = pneg %p218
        $region66: #{tpu_custom_call.1} parent=47 // pred_check_branch
          %736 = sbr.rel (%p734) target = $region68
        $region67: #{tpu_custom_call.1} parent=47 // pred_region
          %s738 = ssub.s32 128, 128
          %739 = vsyncadd %s730, %s738
          %s740 = smul.addr %s29, 4
          %s741 = sadd.s32 %s30, %s740
          %s742 = smul.addr %s741, 32
          %s743 = scalar_lea.hbm %s7, %s742
          %s744 = sshll.u32 %s733, 4
          %s745 = int_to_ptr.vmem [resolvable:$true] %s744
          %750 = dma.vmem_to_hbm [thread:$0]  %s745, 128, %s743, %s730, 32, 32, 2
        $region68: #{tpu_custom_call.1} parent=47 // pred_fallthru
          _
      $region48: #{tpu_custom_call.1} parent=5 // pred_fallthru
        _
      %p751 = scmp.le.s32.totalorder 2, %s20
      // Predicated region
      $region69: #{tpu_custom_call.1} parent=5 // pred_check
        %p752 = pneg %p751
      $region70: #{tpu_custom_call.1} parent=5 // pred_check_branch
        %754 = sbr.rel (%p752) target = $region72
      $region71: #{tpu_custom_call.1} parent=5 // pred_region
        %s755 = ssub.s32 %s20, 2
        // Predicated region
        $region73: #{tpu_custom_call.1} parent=71 // pred_check
          %p756 = pneg %p224
        $region74: #{tpu_custom_call.1} parent=71 // pred_check_branch
          %758 = sbr.rel (%p756) target = $region76
        $region75: #{tpu_custom_call.1} parent=71 // pred_region
          %s759 = sand.u32 %s209, 1
          %s760 = scalar_lea.sflag [#allocation4], %s759
          %s761 = sand.u32 %s209, 1
          %s762 = smul.addr %s761, 8
          %s763 = scalar_lea.vmem [#allocation11], %s762
          %764 = dma.done %s760, 128
        $region76: #{tpu_custom_call.1} parent=71 // pred_fallthru
          _
      $region72: #{tpu_custom_call.1} parent=5 // pred_fallthru
        _
    $region6: #{tpu_custom_call.1} parent=1 // loop_footer
      %s24 = sadd.s32 1, %s20
    $region7: #{tpu_custom_call.1} parent=1 // loop_footer_branch
      %19 = sbr.rel target = $region3
    $region8: #{tpu_custom_call.1} parent=1 // loop_exit
      _
    %765 = vsyncpa [#allocation4], 1
    %s766 = scalar_lea.sflag [#allocation4], 1
    %767 = vsyncpa %s766, 1
    %768 = vsyncpa [#allocation5], 1
    %s769 = scalar_lea.sflag [#allocation5], 1
    %770 = vsyncpa %s769, 1
    %771 = vsyncpa [#allocation6], 1
    %s772 = scalar_lea.sflag [#allocation6], 1
    %773 = vsyncpa %s772, 1
    %774 = vsyncpa [#allocation8], 1

</llo_original>
